<compile_context>
chip_gen: v5e
topology: v5e:2x2
jax: 0.10.0
libtpu: 0.0.40
codegen_flags: <defaults>
</compile_context>

<pallas_src>
import functools
import math

import jax
import jax.numpy as jnp
from jax.experimental import pallas as pl
from jax.experimental.pallas import tpu as pltpu

LN_EPS = 1e-5  # PyTorch nn.LayerNorm default eps


# ------------------------------ shared math -------------------------------- #
def _layer_norm(x, w, b):
    mu = jnp.mean(x, axis=-1, keepdims=True)
    var = jnp.mean((x - mu) ** 2, axis=-1, keepdims=True)
    return (x - mu) * jax.lax.rsqrt(var + LN_EPS) * w + b


def _gelu(x):
    # TODO(synk): PyTorch nn.GELU is exact (erf-based); tanh approximation used
    # here for robust Mosaic lowering (max abs diff ~1e-3 of activation value).
    c = math.sqrt(2.0 / math.pi)
    return 0.5 * x * (1.0 + jnp.tanh(c * (x + 0.044715 * x * x * x)))


def _softmax(s):
    # exact softmax (f32 throughout)
    s = s - jnp.max(s, axis=-1, keepdims=True)
    p = jnp.exp(s)
    return p / jnp.sum(p, axis=-1, keepdims=True)


# ------------------------------ fused kernel -------------------------------- #
def decoder_kernel(x_ref, ln1w, ln1b, wqkv, wproj, projb, ln2w, ln2b,
                   wfc1, fc1b, wfc2, fc2b, nw, nb, wh, bh,
                   o_ref, x_acc, *, num_heads, ret_tokens):
    """Grid = (batch, layer). One batch element per block; the activation lives
    in VMEM scratch across the layer axis (accumulator pattern)."""
    l = pl.program_id(1)

    @pl.when(l == 0)
    def _init():
        x_acc[...] = x_ref[0]

    x = x_acc[...]                                  # (N, D) f32, VMEM resident
    n, d = x.shape
    hd = d // num_heads

    # ---- Attention branch: x + proj(MHSA(LN1(x))) ----
    xn16 = _layer_norm(x, ln1w[0], ln1b[0]).astype(jnp.bfloat16)
    xh = jnp.broadcast_to(xn16[None], (num_heads, n, d))          # (H, N, D)
    # head-major qkv weights (H, D, 3*hd); q columns pre-scaled by hd**-0.5
    qkv = jnp.einsum('hnd,hde->hne', xh, wqkv[0],
                     preferred_element_type=jnp.float32)          # (H, N, 3hd)
    q = qkv[:, :, 0:hd].astype(jnp.bfloat16)
    k = qkv[:, :, hd:2 * hd].astype(jnp.bfloat16)
    v = qkv[:, :, 2 * hd:3 * hd].astype(jnp.bfloat16)
    s = jnp.einsum('hqe,hke->hqk', q, k,
                   preferred_element_type=jnp.float32)            # (H, N, N)
    p = _softmax(s)
    ctx = jnp.einsum('hqk,hke->hqe', p.astype(jnp.bfloat16), v,
                     preferred_element_type=jnp.float32)          # (H, N, hd)
    # per-head slice of the output projection, then reduce heads in f32
    attn_h = jnp.einsum('hqe,hed->hqd', ctx.astype(jnp.bfloat16), wproj[0],
                        preferred_element_type=jnp.float32)       # (H, N, D)
    x = x + jnp.sum(attn_h, axis=0) + projb[0]

    # ---- MLP branch: x + fc2(GELU(fc1(LN2(x)))) ----
    xn2 = _layer_norm(x, ln2w[0], ln2b[0]).astype(jnp.bfloat16)
    h1 = jnp.dot(xn2, wfc1[0], preferred_element_type=jnp.float32) + fc1b[0]
    h1 = _gelu(h1).astype(jnp.bfloat16)
    h2 = jnp.dot(h1, wfc2[0], preferred_element_type=jnp.float32) + fc2b[0]
    x = x + h2
    x_acc[...] = x

    # ---- Final LayerNorm + head, folded into the last layer iteration ----
    @pl.when(l == pl.num_programs(1) - 1)
    def _head():
        xt = x[n - ret_tokens:, :]            # static tail slice, no HBM copy
        xt16 = _layer_norm(xt, nw[...], nb[...]).astype(jnp.bfloat16)
        o_ref[0] = (jnp.dot(xt16, wh[...], preferred_element_type=jnp.float32)
                    + bh[...])


# ------------------------------ pallas wrapper ------------------------------ #
def decoder_forward(x, packed_blocks, norm_w, norm_b, head_w, head_b,
                    return_token_num, num_heads):
    B, N, D = x.shape
    depth = packed_blocks[0].shape[0]
    C = head_w.shape[-1]
    R = return_token_num if return_token_num > 0 else N
    head_params = (norm_w, norm_b, head_w.astype(jnp.bfloat16), head_b)

    def stacked_spec(a):          # weights stacked over layers: index by l
        nd = a.ndim
        return pl.BlockSpec((1,) + a.shape[1:],
                            lambda b, l, _nd=nd: (l,) + (0,) * (_nd - 1))

    def full_spec(a):             # head params: fetched once, constant index
        nd = a.ndim
        return pl.BlockSpec(a.shape, lambda b, l, _nd=nd: (0,) * _nd)

    in_specs = ([pl.BlockSpec((1, N, D), lambda b, l: (b, 0, 0))]
                + [stacked_spec(a) for a in packed_blocks]
                + [full_spec(a) for a in head_params])

    kernel = functools.partial(decoder_kernel, num_heads=num_heads,
                               ret_tokens=R)
    return pl.pallas_call(
        kernel,
        out_shape=jax.ShapeDtypeStruct((B, R, C), jnp.float32),
        grid=(B, depth),
        in_specs=in_specs,
        out_specs=pl.BlockSpec((1, R, C), lambda b, l: (b, 0, 0)),
        scratch_shapes=[pltpu.VMEM((N, D), jnp.float32)],
        compiler_params=pltpu.CompilerParams(
            dimension_semantics=("parallel", "arbitrary")),
    )(x, *packed_blocks, *head_params)


# ------------------------------ parameter init ------------------------------ #
def _xavier_t(key, fan_in, fan_out):
    # PyTorch nn.Linear weight is (out, in); we store its transpose (in, out).
    limit = math.sqrt(6.0 / (fan_in + fan_out))
    return jax.random.uniform(key, (fan_in, fan_out), jnp.float32, -limit, limit)


def init_decoder_params(key, embed_dim, depth, mlp_ratio, num_classes):
    hidden = int(embed_dim * mlp_ratio)
    block_params = []
    for _ in range(depth):
        key, k1, k2, k3, k4 = jax.random.split(key, 5)
        block_params.append((
            jnp.ones((1, embed_dim), jnp.float32),    # ln1 weight
            jnp.zeros((1, embed_dim), jnp.float32),   # ln1 bias
            _xavier_t(k1, embed_dim, 3 * embed_dim),  # qkv W^T (qkv_bias=False)
            _xavier_t(k2, embed_dim, embed_dim),      # attn proj W^T
            jnp.zeros((1, embed_dim), jnp.float32),   # attn proj bias
            jnp.ones((1, embed_dim), jnp.float32),    # ln2 weight
            jnp.zeros((1, embed_dim), jnp.float32),   # ln2 bias
            _xavier_t(k3, embed_dim, hidden),         # fc1 W^T
            jnp.zeros((1, hidden), jnp.float32),      # fc1 bias
            _xavier_t(k4, hidden, embed_dim),         # fc2 W^T
            jnp.zeros((1, embed_dim), jnp.float32),   # fc2 bias
        ))
    key, kh = jax.random.split(key)
    norm_w = jnp.ones((1, embed_dim), jnp.float32)
    norm_b = jnp.zeros((1, embed_dim), jnp.float32)
    head_w = _xavier_t(kh, embed_dim, num_classes)
    head_b = jnp.zeros((1, num_classes), jnp.float32)
    return block_params, norm_w, norm_b, head_w, head_b


def pack_block_params(block_params, num_heads):
    """Stack per-layer params with a leading depth dim, reorganize attention
    weights head-major, fold the softmax scale into q, cast matmul weights to
    bf16 (LayerNorm params and biases stay f32)."""
    D = block_params[0][2].shape[0]
    hd = D // num_heads
    scale = hd ** -0.5

    def heads_out(w):     # (D, D_out) columns ordered (head, hd) -> (H, D, hd)
        return w.reshape(D, num_heads, hd).transpose(1, 0, 2)

    def reorg_qkv(w):     # (D, 3D) -> (H, D, 3*hd); q columns pre-scaled
        wq, wk, wv = w[:, :D], w[:, D:2 * D], w[:, 2 * D:]
        return jnp.concatenate(
            [heads_out(wq) * scale, heads_out(wk), heads_out(wv)], axis=-1)

    def reorg_proj(w):    # (D, D) rows ordered (head, hd) -> (H, hd, D)
        return w.reshape(num_heads, hd, D)

    stk = lambda i: jnp.stack([p[i] for p in block_params])
    return (
        stk(0), stk(1),
        jnp.stack([reorg_qkv(p[2]) for p in block_params]).astype(jnp.bfloat16),
        jnp.stack([reorg_proj(p[3]) for p in block_params]).astype(jnp.bfloat16),
        stk(4), stk(5), stk(6),
        stk(7).astype(jnp.bfloat16), stk(8),
        stk(9).astype(jnp.bfloat16), stk(10),
    )


# ------------------------------ JAX reference ------------------------------- #
def ref_forward(x, block_params, norm_w, norm_b, head_w, head_b,
                return_token_num, num_heads, dot_dtype=jnp.float32):
    """Pure-JAX reference. dot_dtype=float32 reproduces the PyTorch module
    (modulo tanh-GELU); dot_dtype=bfloat16 mirrors the kernel precision policy
    (bf16 matmul operands, f32 accumulation)."""
    cast = lambda a: a.astype(dot_dtype)
    B, N, D = x.shape
    hd = D // num_heads
    scale = hd ** -0.5
    for (ln1w, ln1b, wqkv, wproj, projb, ln2w, ln2b,
         wfc1, fc1b, wfc2, fc2b) in block_params:
        # fold the softmax scale into the q columns (mathematically identical)
        wqkv_s = wqkv.at[:, :D].multiply(scale)
        xn = _layer_norm(x, ln1w[0], ln1b[0])
        qkv = jnp.einsum('bnd,de->bne', cast(xn), cast(wqkv_s),
                         preferred_element_type=jnp.float32)
        qkv = qkv.reshape(B, N, 3, num_heads, hd).transpose(2, 0, 3, 1, 4)
        q, k, v = qkv[0], qkv[1], qkv[2]
        s = jnp.einsum('bhnd,bhmd->bhnm', cast(q), cast(k),
                       preferred_element_type=jnp.float32)
        p = jax.nn.softmax(s, axis=-1)
        ctx = jnp.einsum('bhnm,bhmd->bhnd', cast(p), cast(v),
                         preferred_element_type=jnp.float32)
        ctx = ctx.transpose(0, 2, 1, 3).reshape(B, N, D)
        x = x + jnp.einsum('bnd,de->bne', cast(ctx), cast(wproj),
                           preferred_element_type=jnp.float32) + projb[0]
        xn2 = _layer_norm(x, ln2w[0], ln2b[0])
        h1 = jnp.einsum('bnd,dh->bnh', cast(xn2), cast(wfc1),
                        preferred_element_type=jnp.float32) + fc1b[0]
        h1 = _gelu(h1)
        x = x + jnp.einsum('bnh,hd->bnd', cast(h1), cast(wfc2),
                           preferred_element_type=jnp.float32) + fc2b[0]
    if return_token_num > 0:
        x = x[:, -return_token_num:]
    xn = _layer_norm(x, norm_w[0], norm_b[0])
    return jnp.einsum('bnd,dc->bnc', cast(xn), cast(head_w),
                      preferred_element_type=jnp.float32) + head_b[0]


# ----------------------------------- main ----------------------------------- #
if __name__ == "__main__":
    # Small Decoder config: patch_w=patch_h=4 -> num_classes=16
    embed_dim, depth, num_heads, mlp_ratio = 32, 2, 4, 4.0
    num_classes = 4 * 4
    B, N = 2, 8
    return_token_num = 4

    key = jax.random.PRNGKey(0)
    key, kx, kp = jax.random.split(key, 3)
    x = jax.random.normal(kx, (B, N, embed_dim), jnp.float32)

    block_params, norm_w, norm_b, head_w, head_b = init_decoder_params(
        kp, embed_dim, depth, mlp_ratio, num_classes)
    packed = pack_block_params(block_params, num_heads)

    out = decoder_forward(x, packed, norm_w, norm_b, head_w, head_b,
                          return_token_num, num_heads)
    out = jax.block_until_ready(out)
    assert out.shape == (B, return_token_num, num_classes), out.shape

    # Check vs a reference with the kernel's precision policy (bf16 matmul
    # operands, f32 accumulation, exact softmax).
    ref_bf16 = ref_forward(x, block_params, norm_w, norm_b, head_w, head_b,
                           return_token_num, num_heads, dot_dtype=jnp.bfloat16)
    assert jnp.allclose(out, ref_bf16, atol=1e-2, rtol=1e-2), \
        float(jnp.max(jnp.abs(out - ref_bf16)))

    # Loose check vs the full-f32 (PyTorch-semantics) reference: bounds the
    # precision loss introduced by bf16 matmul operands.
    ref_f32 = ref_forward(x, block_params, norm_w, norm_b, head_w, head_b,
                          return_token_num, num_heads, dot_dtype=jnp.float32)
    assert jnp.allclose(out, ref_f32, atol=2e-1, rtol=2e-1), \
        float(jnp.max(jnp.abs(out - ref_f32)))

    print("KERNEL_OK")
</pallas_src>

<mosaic_0001>
module attributes {stable_mosaic.version = 11 : i64} {
  func.func @decoder_kernel(%arg0: i32, %arg1: i32, %arg2: memref<1x8x32xf32, #tpu.memory_space<vmem>>, %arg3: memref<1x1x32xf32, #tpu.memory_space<vmem>>, %arg4: memref<1x1x32xf32, #tpu.memory_space<vmem>>, %arg5: memref<1x4x32x24xbf16, #tpu.memory_space<vmem>>, %arg6: memref<1x4x8x32xbf16, #tpu.memory_space<vmem>>, %arg7: memref<1x1x32xf32, #tpu.memory_space<vmem>>, %arg8: memref<1x1x32xf32, #tpu.memory_space<vmem>>, %arg9: memref<1x1x32xf32, #tpu.memory_space<vmem>>, %arg10: memref<1x32x128xbf16, #tpu.memory_space<vmem>>, %arg11: memref<1x1x128xf32, #tpu.memory_space<vmem>>, %arg12: memref<1x128x32xbf16, #tpu.memory_space<vmem>>, %arg13: memref<1x1x32xf32, #tpu.memory_space<vmem>>, %arg14: memref<1x32xf32, #tpu.memory_space<vmem>>, %arg15: memref<1x32xf32, #tpu.memory_space<vmem>>, %arg16: memref<32x16xbf16, #tpu.memory_space<vmem>>, %arg17: memref<1x16xf32, #tpu.memory_space<vmem>>, %arg18: memref<1x4x16xf32, #tpu.memory_space<vmem>>, %arg19: memref<8x32xf32, #tpu.memory_space<vmem>>) attributes {dimension_semantics = [#tpu.dimension_semantics<parallel>, #tpu.dimension_semantics<arbitrary>], iteration_bounds = array<i64: 2, 2>, scalar_prefetch = 0 : i64, scratch_operands = 1 : i64, tpu.core_type = #tpu.core_type<tc>, window_params = [{transform_indices = @transform_0, window_bounds = array<i64: 1, 8, 32>}, {transform_indices = @transform_1, window_bounds = array<i64: 1, 1, 32>}, {transform_indices = @transform_2, window_bounds = array<i64: 1, 1, 32>}, {transform_indices = @transform_3, window_bounds = array<i64: 1, 4, 32, 24>}, {transform_indices = @transform_4, window_bounds = array<i64: 1, 4, 8, 32>}, {transform_indices = @transform_5, window_bounds = array<i64: 1, 1, 32>}, {transform_indices = @transform_6, window_bounds = array<i64: 1, 1, 32>}, {transform_indices = @transform_7, window_bounds = array<i64: 1, 1, 32>}, {transform_indices = @transform_8, window_bounds = array<i64: 1, 32, 128>}, {transform_indices = @transform_9, window_bounds = array<i64: 1, 1, 128>}, {transform_indices = @transform_10, window_bounds = array<i64: 1, 128, 32>}, {transform_indices = @transform_11, window_bounds = array<i64: 1, 1, 32>}, {pipeline_mode = #tpu.pipeline_mode<synchronous>, transform_indices = @transform_12, window_bounds = array<i64: 1, 32>}, {pipeline_mode = #tpu.pipeline_mode<synchronous>, transform_indices = @transform_13, window_bounds = array<i64: 1, 32>}, {pipeline_mode = #tpu.pipeline_mode<synchronous>, transform_indices = @transform_14, window_bounds = array<i64: 32, 16>}, {pipeline_mode = #tpu.pipeline_mode<synchronous>, transform_indices = @transform_15, window_bounds = array<i64: 1, 16>}, {transform_indices = @transform_16, window_bounds = array<i64: 1, 4, 16>}]} {
    %c0_i32 = arith.constant 0 : i32
    %0 = arith.cmpi eq, %arg1, %c0_i32 : i32
    %1 = arith.extui %0 : i1 to i32
    %c0_i32_0 = arith.constant 0 : i32
    %2 = arith.cmpi ne, %1, %c0_i32_0 : i32
    scf.if %2 {
      %c0_62 = arith.constant 0 : index
      %c0_63 = arith.constant 0 : index
      %c0_64 = arith.constant 0 : index
      %125 = vector.load %arg2[%c0_62, %c0_63, %c0_64] : memref<1x8x32xf32, #tpu.memory_space<vmem>>, vector<1x8x32xf32>
      %126 = vector.shape_cast %125 : vector<1x8x32xf32> to vector<8x32xf32>
      %c0_65 = arith.constant 0 : index
      %c0_66 = arith.constant 0 : index
      %127 = vector.load %arg19[%c0_65, %c0_66] : memref<8x32xf32, #tpu.memory_space<vmem>>, vector<8x32xf32>
      tpu.vector_store %arg19[%c0_65, %c0_66], %126 {strides = array<i32>} : memref<8x32xf32, #tpu.memory_space<vmem>>, vector<8x32xf32>,
    } else {
    }
    %c0 = arith.constant 0 : index
    %c0_1 = arith.constant 0 : index
    %3 = vector.load %arg19[%c0, %c0_1] : memref<8x32xf32, #tpu.memory_space<vmem>>, vector<8x32xf32>
    %c0_2 = arith.constant 0 : index
    %c0_3 = arith.constant 0 : index
    %c0_4 = arith.constant 0 : index
    %4 = vector.load %arg3[%c0_2, %c0_3, %c0_4] : memref<1x1x32xf32, #tpu.memory_space<vmem>>, vector<1x1x32xf32>
    %5 = vector.shape_cast %4 : vector<1x1x32xf32> to vector<1x32xf32>
    %c0_5 = arith.constant 0 : index
    %c0_6 = arith.constant 0 : index
    %c0_7 = arith.constant 0 : index
    %6 = vector.load %arg4[%c0_5, %c0_6, %c0_7] : memref<1x1x32xf32, #tpu.memory_space<vmem>>, vector<1x1x32xf32>
    %7 = vector.shape_cast %6 : vector<1x1x32xf32> to vector<1x32xf32>
    %cst = arith.constant dense<0.000000e+00> : vector<8xf32>
    %8 = vector.multi_reduction <add>, %3, %cst [1] : vector<8x32xf32> to vector<8xf32>
    %9 = vector.shape_cast %8 : vector<8xf32> to vector<8x1xf32>
    %cst_8 = arith.constant 3.200000e+01 : f32
    %10 = vector.broadcast %cst_8 : f32 to vector<8x1xf32>
    %11 = arith.divf %9, %10 : vector<8x1xf32>
    %12 = vector.broadcast %11 : vector<8x1xf32> to vector<8x32xf32>
    %13 = arith.subf %3, %12 : vector<8x32xf32>
    %14 = arith.mulf %13, %13 : vector<8x32xf32>
    %cst_9 = arith.constant dense<0.000000e+00> : vector<8xf32>
    %15 = vector.multi_reduction <add>, %14, %cst_9 [1] : vector<8x32xf32> to vector<8xf32>
    %16 = vector.shape_cast %15 : vector<8xf32> to vector<8x1xf32>
    %cst_10 = arith.constant 3.200000e+01 : f32
    %17 = vector.broadcast %cst_10 : f32 to vector<8x1xf32>
    %18 = arith.divf %16, %17 : vector<8x1xf32>
    %19 = vector.broadcast %11 : vector<8x1xf32> to vector<8x32xf32>
    %20 = arith.subf %3, %19 : vector<8x32xf32>
    %cst_11 = arith.constant 9.99999974E-6 : f32
    %21 = vector.broadcast %cst_11 : f32 to vector<8x1xf32>
    %22 = arith.addf %18, %21 : vector<8x1xf32>
    %23 = math.rsqrt %22 : vector<8x1xf32>
    %24 = vector.broadcast %23 : vector<8x1xf32> to vector<8x32xf32>
    %25 = arith.mulf %20, %24 : vector<8x32xf32>
    %26 = vector.broadcast %5 : vector<1x32xf32> to vector<8x32xf32>
    %27 = arith.mulf %25, %26 : vector<8x32xf32>
    %28 = vector.broadcast %7 : vector<1x32xf32> to vector<8x32xf32>
    %29 = arith.addf %27, %28 : vector<8x32xf32>
    %30 = arith.truncf %29 : vector<8x32xf32> to vector<8x32xbf16>
    %31 = vector.shape_cast %30 : vector<8x32xbf16> to vector<1x8x32xbf16>
    %32 = vector.shape_cast %31 : vector<1x8x32xbf16> to vector<1x8x32xbf16>
    %33 = vector.broadcast %32 : vector<1x8x32xbf16> to vector<4x8x32xbf16>
    %c0_12 = arith.constant 0 : index
    %c0_13 = arith.constant 0 : index
    %c0_14 = arith.constant 0 : index
    %c0_15 = arith.constant 0 : index
    %34 = vector.load %arg5[%c0_12, %c0_13, %c0_14, %c0_15] : memref<1x4x32x24xbf16, #tpu.memory_space<vmem>>, vector<1x4x32x24xbf16>
    %35 = vector.shape_cast %34 : vector<1x4x32x24xbf16> to vector<4x32x24xbf16>
    "tpu.trace_start"() <{level = 10 : i32, message = "hnd,hde->hne"}> : () -> ()
    %cst_16 = arith.constant dense<0.000000e+00> : vector<4x8x24xf32>
    %36 = tpu.matmul %33, %35, %cst_16 {dimension_numbers = #tpu.dot_dimension_numbers<[2], [1], [1], [2], [0, 0, 0, 1, 1, 2], [0], [0]>} : vector<4x8x32xbf16>, vector<4x32x24xbf16>, vector<4x8x24xf32> -> vector<4x8x24xf32>
    "tpu.trace_stop"() : () -> ()
    %37 = vector.extract_strided_slice %36 {offsets = [0, 0, 0], sizes = [4, 8, 8], strides = [1, 1, 1]} : vector<4x8x24xf32> to vector<4x8x8xf32>
    %38 = arith.truncf %37 : vector<4x8x8xf32> to vector<4x8x8xbf16>
    %39 = vector.extract_strided_slice %36 {offsets = [0, 0, 8], sizes = [4, 8, 8], strides = [1, 1, 1]} : vector<4x8x24xf32> to vector<4x8x8xf32>
    %40 = arith.truncf %39 : vector<4x8x8xf32> to vector<4x8x8xbf16>
    %41 = vector.extract_strided_slice %36 {offsets = [0, 0, 16], sizes = [4, 8, 8], strides = [1, 1, 1]} : vector<4x8x24xf32> to vector<4x8x8xf32>
    %42 = arith.truncf %41 : vector<4x8x8xf32> to vector<4x8x8xbf16>
    "tpu.trace_start"() <{level = 10 : i32, message = "hqe,hke->hqk"}> : () -> ()
    %cst_17 = arith.constant dense<0.000000e+00> : vector<4x8x8xf32>
    %43 = tpu.matmul %38, %40, %cst_17 {dimension_numbers = #tpu.dot_dimension_numbers<[2], [2], [1], [1], [0, 0, 0, 1, 1, 1], [0], [0]>} : vector<4x8x8xbf16>, vector<4x8x8xbf16>, vector<4x8x8xf32> -> vector<4x8x8xf32>
    "tpu.trace_stop"() : () -> ()
    %cst_18 = arith.constant dense<0xFF800000> : vector<4x8xf32>
    %44 = vector.multi_reduction <maximumf>, %43, %cst_18 [2] : vector<4x8x8xf32> to vector<4x8xf32>
    %45 = vector.shape_cast %44 : vector<4x8xf32> to vector<4x8x1xf32>
    %46 = vector.broadcast %45 : vector<4x8x1xf32> to vector<4x8x8xf32>
    %47 = arith.subf %43, %46 : vector<4x8x8xf32>
    %48 = math.exp %47 : vector<4x8x8xf32>
    %cst_19 = arith.constant dense<0.000000e+00> : vector<4x8xf32>
    %49 = vector.multi_reduction <add>, %48, %cst_19 [2] : vector<4x8x8xf32> to vector<4x8xf32>
    %50 = vector.shape_cast %49 : vector<4x8xf32> to vector<4x8x1xf32>
    %51 = vector.broadcast %50 : vector<4x8x1xf32> to vector<4x8x8xf32>
    %52 = arith.divf %48, %51 : vector<4x8x8xf32>
    %53 = arith.truncf %52 : vector<4x8x8xf32> to vector<4x8x8xbf16>
    "tpu.trace_start"() <{level = 10 : i32, message = "hqk,hke->hqe"}> : () -> ()
    %cst_20 = arith.constant dense<0.000000e+00> : vector<4x8x8xf32>
    %54 = tpu.matmul %53, %42, %cst_20 {dimension_numbers = #tpu.dot_dimension_numbers<[2], [1], [1], [2], [0, 0, 0, 1, 1, 2], [0], [0]>} : vector<4x8x8xbf16>, vector<4x8x8xbf16>, vector<4x8x8xf32> -> vector<4x8x8xf32>
    "tpu.trace_stop"() : () -> ()
    %55 = arith.truncf %54 : vector<4x8x8xf32> to vector<4x8x8xbf16>
    %c0_21 = arith.constant 0 : index
    %c0_22 = arith.constant 0 : index
    %c0_23 = arith.constant 0 : index
    %c0_24 = arith.constant 0 : index
    %56 = vector.load %arg6[%c0_21, %c0_22, %c0_23, %c0_24] : memref<1x4x8x32xbf16, #tpu.memory_space<vmem>>, vector<1x4x8x32xbf16>
    %57 = vector.shape_cast %56 : vector<1x4x8x32xbf16> to vector<4x8x32xbf16>
    "tpu.trace_start"() <{level = 10 : i32, message = "hqe,hed->hqd"}> : () -> ()
    %cst_25 = arith.constant dense<0.000000e+00> : vector<4x8x32xf32>
    %58 = tpu.matmul %55, %57, %cst_25 {dimension_numbers = #tpu.dot_dimension_numbers<[2], [1], [1], [2], [0, 0, 0, 1, 1, 2], [0], [0]>} : vector<4x8x8xbf16>, vector<4x8x32xbf16>, vector<4x8x32xf32> -> vector<4x8x32xf32>
    "tpu.trace_stop"() : () -> ()
    %cst_26 = arith.constant dense<0.000000e+00> : vector<8x32xf32>
    %59 = vector.multi_reduction <add>, %58, %cst_26 [0] : vector<4x8x32xf32> to vector<8x32xf32>
    %60 = arith.addf %3, %59 : vector<8x32xf32>
    %c0_27 = arith.constant 0 : index
    %c0_28 = arith.constant 0 : index
    %c0_29 = arith.constant 0 : index
    %61 = vector.load %arg7[%c0_27, %c0_28, %c0_29] : memref<1x1x32xf32, #tpu.memory_space<vmem>>, vector<1x1x32xf32>
    %62 = vector.shape_cast %61 : vector<1x1x32xf32> to vector<1x32xf32>
    %63 = vector.broadcast %62 : vector<1x32xf32> to vector<8x32xf32>
    %64 = arith.addf %60, %63 : vector<8x32xf32>
    %c0_30 = arith.constant 0 : index
    %c0_31 = arith.constant 0 : index
    %c0_32 = arith.constant 0 : index
    %65 = vector.load %arg8[%c0_30, %c0_31, %c0_32] : memref<1x1x32xf32, #tpu.memory_space<vmem>>, vector<1x1x32xf32>
    %66 = vector.shape_cast %65 : vector<1x1x32xf32> to vector<1x32xf32>
    %c0_33 = arith.constant 0 : index
    %c0_34 = arith.constant 0 : index
    %c0_35 = arith.constant 0 : index
    %67 = vector.load %arg9[%c0_33, %c0_34, %c0_35] : memref<1x1x32xf32, #tpu.memory_space<vmem>>, vector<1x1x32xf32>
    %68 = vector.shape_cast %67 : vector<1x1x32xf32> to vector<1x32xf32>
    %cst_36 = arith.constant dense<0.000000e+00> : vector<8xf32>
    %69 = vector.multi_reduction <add>, %64, %cst_36 [1] : vector<8x32xf32> to vector<8xf32>
    %70 = vector.shape_cast %69 : vector<8xf32> to vector<8x1xf32>
    %cst_37 = arith.constant 3.200000e+01 : f32
    %71 = vector.broadcast %cst_37 : f32 to vector<8x1xf32>
    %72 = arith.divf %70, %71 : vector<8x1xf32>
    %73 = vector.broadcast %72 : vector<8x1xf32> to vector<8x32xf32>
    %74 = arith.subf %64, %73 : vector<8x32xf32>
    %75 = arith.mulf %74, %74 : vector<8x32xf32>
    %cst_38 = arith.constant dense<0.000000e+00> : vector<8xf32>
    %76 = vector.multi_reduction <add>, %75, %cst_38 [1] : vector<8x32xf32> to vector<8xf32>
    %77 = vector.shape_cast %76 : vector<8xf32> to vector<8x1xf32>
    %cst_39 = arith.constant 3.200000e+01 : f32
    %78 = vector.broadcast %cst_39 : f32 to vector<8x1xf32>
    %79 = arith.divf %77, %78 : vector<8x1xf32>
    %80 = vector.broadcast %72 : vector<8x1xf32> to vector<8x32xf32>
    %81 = arith.subf %64, %80 : vector<8x32xf32>
    %cst_40 = arith.constant 9.99999974E-6 : f32
    %82 = vector.broadcast %cst_40 : f32 to vector<8x1xf32>
    %83 = arith.addf %79, %82 : vector<8x1xf32>
    %84 = math.rsqrt %83 : vector<8x1xf32>
    %85 = vector.broadcast %84 : vector<8x1xf32> to vector<8x32xf32>
    %86 = arith.mulf %81, %85 : vector<8x32xf32>
    %87 = vector.broadcast %66 : vector<1x32xf32> to vector<8x32xf32>
    %88 = arith.mulf %86, %87 : vector<8x32xf32>
    %89 = vector.broadcast %68 : vector<1x32xf32> to vector<8x32xf32>
    %90 = arith.addf %88, %89 : vector<8x32xf32>
    %91 = arith.truncf %90 : vector<8x32xf32> to vector<8x32xbf16>
    %c0_41 = arith.constant 0 : index
    %c0_42 = arith.constant 0 : index
    %c0_43 = arith.constant 0 : index
    %92 = vector.load %arg10[%c0_41, %c0_42, %c0_43] : memref<1x32x128xbf16, #tpu.memory_space<vmem>>, vector<1x32x128xbf16>
    %93 = vector.shape_cast %92 : vector<1x32x128xbf16> to vector<32x128xbf16>
    %cst_44 = arith.constant dense<0.000000e+00> : vector<8x128xf32>
    %94 = tpu.matmul %91, %93, %cst_44 {dimension_numbers = #tpu.dot_dimension_numbers<[1], [0], [0], [1], [0, 0, 1, 1], [], []>} : vector<8x32xbf16>, vector<32x128xbf16>, vector<8x128xf32> -> vector<8x128xf32>
    %c0_45 = arith.constant 0 : index
    %c0_46 = arith.constant 0 : index
    %c0_47 = arith.constant 0 : index
    %95 = vector.load %arg11[%c0_45, %c0_46, %c0_47] : memref<1x1x128xf32, #tpu.memory_space<vmem>>, vector<1x1x128xf32>
    %96 = vector.shape_cast %95 : vector<1x1x128xf32> to vector<1x128xf32>
    %97 = vector.broadcast %96 : vector<1x128xf32> to vector<8x128xf32>
    %98 = arith.addf %94, %97 : vector<8x128xf32>
    %cst_48 = arith.constant 5.000000e-01 : f32
    %99 = vector.broadcast %cst_48 : f32 to vector<8x128xf32>
    %100 = arith.mulf %99, %98 : vector<8x128xf32>
    %cst_49 = arith.constant 4.471500e-02 : f32
    %101 = vector.broadcast %cst_49 : f32 to vector<8x128xf32>
    %102 = arith.mulf %101, %98 : vector<8x128xf32>
    %103 = arith.mulf %102, %98 : vector<8x128xf32>
    %104 = arith.mulf %103, %98 : vector<8x128xf32>
    %105 = arith.addf %98, %104 : vector<8x128xf32>
    %cst_50 = arith.constant 0.797884583 : f32
    %106 = vector.broadcast %cst_50 : f32 to vector<8x128xf32>
    %107 = arith.mulf %106, %105 : vector<8x128xf32>
    %108 = math.tanh %107 : vector<8x128xf32>
    %cst_51 = arith.constant 1.000000e+00 : f32
    %109 = vector.broadcast %cst_51 : f32 to vector<8x128xf32>
    %110 = arith.addf %109, %108 : vector<8x128xf32>
    %111 = arith.mulf %100, %110 : vector<8x128xf32>
    %112 = arith.truncf %111 : vector<8x128xf32> to vector<8x128xbf16>
    %c0_52 = arith.constant 0 : index
    %c0_53 = arith.constant 0 : index
    %c0_54 = arith.constant 0 : index
    %113 = vector.load %arg12[%c0_52, %c0_53, %c0_54] : memref<1x128x32xbf16, #tpu.memory_space<vmem>>, vector<1x128x32xbf16>
    %114 = vector.shape_cast %113 : vector<1x128x32xbf16> to vector<128x32xbf16>
    %cst_55 = arith.constant dense<0.000000e+00> : vector<8x32xf32>
    %115 = tpu.matmul %112, %114, %cst_55 {dimension_numbers = #tpu.dot_dimension_numbers<[1], [0], [0], [1], [0, 0, 1, 1], [], []>} : vector<8x128xbf16>, vector<128x32xbf16>, vector<8x32xf32> -> vector<8x32xf32>
    %c0_56 = arith.constant 0 : index
    %c0_57 = arith.constant 0 : index
    %c0_58 = arith.constant 0 : index
    %116 = vector.load %arg13[%c0_56, %c0_57, %c0_58] : memref<1x1x32xf32, #tpu.memory_space<vmem>>, vector<1x1x32xf32>
    %117 = vector.shape_cast %116 : vector<1x1x32xf32> to vector<1x32xf32>
    %118 = vector.broadcast %117 : vector<1x32xf32> to vector<8x32xf32>
    %119 = arith.addf %115, %118 : vector<8x32xf32>
    %120 = arith.addf %64, %119 : vector<8x32xf32>
    %c0_59 = arith.constant 0 : index
    %c0_60 = arith.constant 0 : index
    %121 = vector.load %arg19[%c0_59, %c0_60] : memref<8x32xf32, #tpu.memory_space<vmem>>, vector<8x32xf32>
    tpu.vector_store %arg19[%c0_59, %c0_60], %120 {strides = array<i32>} : memref<8x32xf32, #tpu.memory_space<vmem>>, vector<8x32xf32>,
    %c1_i32 = arith.constant 1 : i32
    %122 = arith.cmpi eq, %arg1, %c1_i32 : i32
    %123 = arith.extui %122 : i1 to i32
    %c0_i32_61 = arith.constant 0 : i32
    %124 = arith.cmpi ne, %123, %c0_i32_61 : i32
    scf.if %124 {
      %125 = vector.extract_strided_slice %120 {offsets = [4, 0], sizes = [4, 32], strides = [1, 1]} : vector<8x32xf32> to vector<4x32xf32>
      %c0_62 = arith.constant 0 : index
      %c0_63 = arith.constant 0 : index
      %126 = vector.load %arg14[%c0_62, %c0_63] : memref<1x32xf32, #tpu.memory_space<vmem>>, vector<1x32xf32>
      %c0_64 = arith.constant 0 : index
      %c0_65 = arith.constant 0 : index
      %127 = vector.load %arg15[%c0_64, %c0_65] : memref<1x32xf32, #tpu.memory_space<vmem>>, vector<1x32xf32>
      %cst_66 = arith.constant dense<0.000000e+00> : vector<4xf32>
      %128 = vector.multi_reduction <add>, %125, %cst_66 [1] : vector<4x32xf32> to vector<4xf32>
      %129 = vector.shape_cast %128 : vector<4xf32> to vector<4x1xf32>
      %cst_67 = arith.constant 3.200000e+01 : f32
      %130 = vector.broadcast %cst_67 : f32 to vector<4x1xf32>
      %131 = arith.divf %129, %130 : vector<4x1xf32>
      %132 = vector.broadcast %131 : vector<4x1xf32> to vector<4x32xf32>
      %133 = arith.subf %125, %132 : vector<4x32xf32>
      %134 = arith.mulf %133, %133 : vector<4x32xf32>
      %cst_68 = arith.constant dense<0.000000e+00> : vector<4xf32>
      %135 = vector.multi_reduction <add>, %134, %cst_68 [1] : vector<4x32xf32> to vector<4xf32>
      %136 = vector.shape_cast %135 : vector<4xf32> to vector<4x1xf32>
      %cst_69 = arith.constant 3.200000e+01 : f32
      %137 = vector.broadcast %cst_69 : f32 to vector<4x1xf32>
      %138 = arith.divf %136, %137 : vector<4x1xf32>
      %139 = vector.broadcast %131 : vector<4x1xf32> to vector<4x32xf32>
      %140 = arith.subf %125, %139 : vector<4x32xf32>
      %cst_70 = arith.constant 9.99999974E-6 : f32
      %141 = vector.broadcast %cst_70 : f32 to vector<4x1xf32>
      %142 = arith.addf %138, %141 : vector<4x1xf32>
      %143 = math.rsqrt %142 : vector<4x1xf32>
      %144 = vector.broadcast %143 : vector<4x1xf32> to vector<4x32xf32>
      %145 = arith.mulf %140, %144 : vector<4x32xf32>
      %146 = vector.broadcast %126 : vector<1x32xf32> to vector<4x32xf32>
      %147 = arith.mulf %145, %146 : vector<4x32xf32>
      %148 = vector.broadcast %127 : vector<1x32xf32> to vector<4x32xf32>
      %149 = arith.addf %147, %148 : vector<4x32xf32>
      %150 = arith.truncf %149 : vector<4x32xf32> to vector<4x32xbf16>
      %c0_71 = arith.constant 0 : index
      %c0_72 = arith.constant 0 : index
      %151 = vector.load %arg16[%c0_71, %c0_72] : memref<32x16xbf16, #tpu.memory_space<vmem>>, vector<32x16xbf16>
      %cst_73 = arith.constant dense<0.000000e+00> : vector<4x16xf32>
      %152 = tpu.matmul %150, %151, %cst_73 {dimension_numbers = #tpu.dot_dimension_numbers<[1], [0], [0], [1], [0, 0, 1, 1], [], []>} : vector<4x32xbf16>, vector<32x16xbf16>, vector<4x16xf32> -> vector<4x16xf32>
      %c0_74 = arith.constant 0 : index
      %c0_75 = arith.constant 0 : index
      %153 = vector.load %arg17[%c0_74, %c0_75] : memref<1x16xf32, #tpu.memory_space<vmem>>, vector<1x16xf32>
      %154 = vector.broadcast %153 : vector<1x16xf32> to vector<4x16xf32>
      %155 = arith.addf %152, %154 : vector<4x16xf32>
      %c0_76 = arith.constant 0 : index
      %c0_77 = arith.constant 0 : index
      %c0_78 = arith.constant 0 : index
      %156 = vector.load %arg18[%c0_76, %c0_77, %c0_78] : memref<1x4x16xf32, #tpu.memory_space<vmem>>, vector<1x4x16xf32>
      %157 = vector.shape_cast %156 : vector<1x4x16xf32> to vector<4x16xf32>
      %158 = vector.shape_cast %155 : vector<4x16xf32> to vector<1x4x16xf32>
      tpu.vector_store %arg18[%c0_76, %c0_77, %c0_78], %158 {strides = array<i32>} : memref<1x4x16xf32, #tpu.memory_space<vmem>>, vector<1x4x16xf32>,
    } else {
    }
    return
  }
  func.func @transform_0(%arg0: i32, %arg1: i32) -> (i32, i32, i32) {
    %c0_i32 = arith.constant 0 : i32
    %c0_i32_0 = arith.constant 0 : i32
    %c0_i32_1 = arith.constant 0 : i32
    return %arg0, %c0_i32, %c0_i32_0 : i32, i32, i32
  }
  func.func @transform_1(%arg0: i32, %arg1: i32) -> (i32, i32, i32) {
    %c0_i32 = arith.constant 0 : i32
    %c0_i32_0 = arith.constant 0 : i32
    %c0_i32_1 = arith.constant 0 : i32
    return %arg1, %c0_i32, %c0_i32_0 : i32, i32, i32
  }
  func.func @transform_2(%arg0: i32, %arg1: i32) -> (i32, i32, i32) {
    %c0_i32 = arith.constant 0 : i32
    %c0_i32_0 = arith.constant 0 : i32
    %c0_i32_1 = arith.constant 0 : i32
    return %arg1, %c0_i32, %c0_i32_0 : i32, i32, i32
  }
  func.func @transform_3(%arg0: i32, %arg1: i32) -> (i32, i32, i32, i32) {
    %c0_i32 = arith.constant 0 : i32
    %c0_i32_0 = arith.constant 0 : i32
    %c0_i32_1 = arith.constant 0 : i32
    %c0_i32_2 = arith.constant 0 : i32
    return %arg1, %c0_i32, %c0_i32_0, %c0_i32_1 : i32, i32, i32, i32
  }
  func.func @transform_4(%arg0: i32, %arg1: i32) -> (i32, i32, i32, i32) {
    %c0_i32 = arith.constant 0 : i32
    %c0_i32_0 = arith.constant 0 : i32
    %c0_i32_1 = arith.constant 0 : i32
    %c0_i32_2 = arith.constant 0 : i32
    return %arg1, %c0_i32, %c0_i32_0, %c0_i32_1 : i32, i32, i32, i32
  }
  func.func @transform_5(%arg0: i32, %arg1: i32) -> (i32, i32, i32) {
    %c0_i32 = arith.constant 0 : i32
    %c0_i32_0 = arith.constant 0 : i32
    %c0_i32_1 = arith.constant 0 : i32
    return %arg1, %c0_i32, %c0_i32_0 : i32, i32, i32
  }
  func.func @transform_6(%arg0: i32, %arg1: i32) -> (i32, i32, i32) {
    %c0_i32 = arith.constant 0 : i32
    %c0_i32_0 = arith.constant 0 : i32
    %c0_i32_1 = arith.constant 0 : i32
    return %arg1, %c0_i32, %c0_i32_0 : i32, i32, i32
  }
  func.func @transform_7(%arg0: i32, %arg1: i32) -> (i32, i32, i32) {
    %c0_i32 = arith.constant 0 : i32
    %c0_i32_0 = arith.constant 0 : i32
    %c0_i32_1 = arith.constant 0 : i32
    return %arg1, %c0_i32, %c0_i32_0 : i32, i32, i32
  }
  func.func @transform_8(%arg0: i32, %arg1: i32) -> (i32, i32, i32) {
    %c0_i32 = arith.constant 0 : i32
    %c0_i32_0 = arith.constant 0 : i32
    %c0_i32_1 = arith.constant 0 : i32
    return %arg1, %c0_i32, %c0_i32_0 : i32, i32, i32
  }
  func.func @transform_9(%arg0: i32, %arg1: i32) -> (i32, i32, i32) {
    %c0_i32 = arith.constant 0 : i32
    %c0_i32_0 = arith.constant 0 : i32
    %c0_i32_1 = arith.constant 0 : i32
    return %arg1, %c0_i32, %c0_i32_0 : i32, i32, i32
  }
  func.func @transform_10(%arg0: i32, %arg1: i32) -> (i32, i32, i32) {
    %c0_i32 = arith.constant 0 : i32
    %c0_i32_0 = arith.constant 0 : i32
    %c0_i32_1 = arith.constant 0 : i32
    return %arg1, %c0_i32, %c0_i32_0 : i32, i32, i32
  }
  func.func @transform_11(%arg0: i32, %arg1: i32) -> (i32, i32, i32) {
    %c0_i32 = arith.constant 0 : i32
    %c0_i32_0 = arith.constant 0 : i32
    %c0_i32_1 = arith.constant 0 : i32
    return %arg1, %c0_i32, %c0_i32_0 : i32, i32, i32
  }
  func.func @transform_12(%arg0: i32, %arg1: i32) -> (i32, i32) {
    %c0_i32 = arith.constant 0 : i32
    %c0_i32_0 = arith.constant 0 : i32
    %c0_i32_1 = arith.constant 0 : i32
    return %c0_i32, %c0_i32_0 : i32, i32
  }
  func.func @transform_13(%arg0: i32, %arg1: i32) -> (i32, i32) {
    %c0_i32 = arith.constant 0 : i32
    %c0_i32_0 = arith.constant 0 : i32
    %c0_i32_1 = arith.constant 0 : i32
    return %c0_i32, %c0_i32_0 : i32, i32
  }
  func.func @transform_14(%arg0: i32, %arg1: i32) -> (i32, i32) {
    %c0_i32 = arith.constant 0 : i32
    %c0_i32_0 = arith.constant 0 : i32
    %c0_i32_1 = arith.constant 0 : i32
    return %c0_i32, %c0_i32_0 : i32, i32
  }
  func.func @transform_15(%arg0: i32, %arg1: i32) -> (i32, i32) {
    %c0_i32 = arith.constant 0 : i32
    %c0_i32_0 = arith.constant 0 : i32
    %c0_i32_1 = arith.constant 0 : i32
    return %c0_i32, %c0_i32_0 : i32, i32
  }
  func.func @transform_16(%arg0: i32, %arg1: i32) -> (i32, i32, i32) {
    %c0_i32 = arith.constant 0 : i32
    %c0_i32_0 = arith.constant 0 : i32
    %c0_i32_1 = arith.constant 0 : i32
    return %arg0, %c0_i32, %c0_i32_0 : i32, i32, i32
  }
}

</mosaic_0001>

<llo_original>
// kernel: tpu_custom_call.1
$region0: #{tpu_custom_call.1}
  #allocation0 [shape = 'u32[]', space=smem, size = 0x4, offset = 0x4, fixed_abs, tag = 'smem constant byte address 0x4 - core index']
  #allocation1 [shape = 'u32[72,128]{1,0:T(1,128)}', space=vmem, size = 0x9000, scoped, tag = 'internal scratch']
  #allocation2 [shape = 'f32[8,32]{1,0:T(8,128)}', space=vmem, size = 0x1000, scoped, tag = 'scratch operand']
  %s0 = inlined_call_operand.vmem [shape: f32[2,8,32], index: 0, kind: input, shape index: {}]
  %s1 = inlined_call_operand.vmem [shape: f32[2,1,32], index: 1, kind: input, shape index: {}]
  %s2 = inlined_call_operand.vmem [shape: f32[2,1,32], index: 2, kind: input, shape index: {}]
  %s3 = inlined_call_operand.vmem [shape: bf16[2,4,32,24], index: 3, kind: input, shape index: {}]
  %s4 = inlined_call_operand.vmem [shape: bf16[2,4,8,32], index: 4, kind: input, shape index: {}]
  %s5 = inlined_call_operand.vmem [shape: f32[2,1,32], index: 5, kind: input, shape index: {}]
  %s6 = inlined_call_operand.vmem [shape: f32[2,1,32], index: 6, kind: input, shape index: {}]
  %s7 = inlined_call_operand.vmem [shape: f32[2,1,32], index: 7, kind: input, shape index: {}]
  %s8 = inlined_call_operand.vmem [shape: bf16[2,32,128], index: 8, kind: input, shape index: {}]
  %s9 = inlined_call_operand.vmem [shape: f32[2,1,128], index: 9, kind: input, shape index: {}]
  %s10 = inlined_call_operand.vmem [shape: bf16[2,128,32], index: 10, kind: input, shape index: {}]
  %s11 = inlined_call_operand.vmem [shape: f32[2,1,32], index: 11, kind: input, shape index: {}]
  %s12 = inlined_call_operand.vmem [shape: f32[1,32], index: 12, kind: input, shape index: {}]
  %s13 = inlined_call_operand.vmem [shape: f32[1,32], index: 13, kind: input, shape index: {}]
  %s14 = inlined_call_operand.vmem [shape: bf16[32,16], index: 14, kind: input, shape index: {}]
  %s15 = inlined_call_operand.vmem [shape: f32[1,16], index: 15, kind: input, shape index: {}]
  %s16 = inlined_call_operand.hbm [shape: f32[2,4,16], index: 16, kind: output, shape index: {}]
  %s17 = sld [smem:[#allocation0]]
  $region105: #{tpu_custom_call.1} parent=0
    _
  %s19 = ssub.s32 1, %s17
  %s20 = scalar_select 0, %s19, %s17
  $region1: #{tpu_custom_call.1} parent=0
    #allocation3 [shape = 'u8[4096]{0}', space=vmem, size = 0x1000, scoped, tag = 'output window, operand 0']
    #allocation4 [shape = 's32[2]{0}', space=sflag, size = 0x8, scoped, tag = 'scoped memory for tpu_custom_call.1']
    %21 = vsyncpa [#allocation4], 0
    %s22 = scalar_lea.sflag [#allocation4], 1
    %23 = vsyncpa %s22, 0
    loop: start=0, step=1, limit=6
    $region2: #{tpu_custom_call.1} parent=1 // loop_pre_header
      _
    $region3: #{tpu_custom_call.1} parent=1 // loop_header
      %s25 = sphi 0, %s29
      %p26 = scmp.ge.s32.totalorder %s25, 6
      %s32 = sphi 0, %s44
      %s33 = sphi 0, %s40
      %s34 = sphi 0, %s32
      %s35 = sphi 0, %s33
      %s36 = sphi 0, %s34
      %s37 = sphi 0, %s35
      %s47 = sphi 0, %s49
      %s50 = sphi 0, %s47
      %s51 = sphi 0, %s50
      %s67 = sphi 0, %s51
      %s73 = sphi 0, %s75
      %s76 = sphi 0, %s73
      %s77 = sphi 0, %s76
      %s93 = sphi 0, %s77
      %s99 = sphi 0, %s101
      %s102 = sphi 0, %s99
      %s103 = sphi 0, %s102
      %s119 = sphi 0, %s103
      %s125 = sphi 0, %s127
      %s128 = sphi 0, %s125
      %s129 = sphi 0, %s128
      %s145 = sphi 0, %s129
      %s151 = sphi 0, %s153
      %s154 = sphi 0, %s151
      %s155 = sphi 0, %s154
      %s171 = sphi 0, %s155
      %s177 = sphi 0, %s179
      %s180 = sphi 0, %s177
      %s181 = sphi 0, %s180
      %s197 = sphi 0, %s181
      %s203 = sphi 0, %s205
      %s206 = sphi 0, %s203
      %s207 = sphi 0, %s206
      %s223 = sphi 0, %s207
      %s229 = sphi 0, %s231
      %s232 = sphi 0, %s229
      %s233 = sphi 0, %s232
      %s249 = sphi 0, %s233
      %s255 = sphi 0, %s257
      %s258 = sphi 0, %s255
      %s259 = sphi 0, %s258
      %s275 = sphi 0, %s259
      %s281 = sphi 0, %s283
      %s284 = sphi 0, %s281
      %s285 = sphi 0, %s284
      %s301 = sphi 0, %s285
      %s307 = sphi 0, %s309
      %s310 = sphi 0, %s307
      %s311 = sphi 0, %s310
      %s327 = sphi 0, %s311
      %s333 = sphi 0, %s335
      %s336 = sphi 0, %s333
      %s337 = sphi 0, %s336
      %s353 = sphi 0, %s337
      %s357 = sphi 0, %s357
      %s359 = sphi 0, %s357
      %s360 = sphi 0, %s359
      %s374 = sphi 0, %s360
      %s378 = sphi 0, %s378
      %s380 = sphi 0, %s378
      %s381 = sphi 0, %s380
      %s395 = sphi 0, %s381
      %s399 = sphi 0, %s399
      %s401 = sphi 0, %s399
      %s402 = sphi 0, %s401
      %s416 = sphi 0, %s402
      %s420 = sphi 0, %s420
      %s422 = sphi 0, %s420
      %s423 = sphi 0, %s422
      %s437 = sphi 0, %s423
      %s443 = sphi 0, %s445
      %s446 = sphi 0, %s443
      %s447 = sphi 0, %s446
      %s463 = sphi 0, %s447
    $region4: #{tpu_custom_call.1} parent=1 // loop_header_branch
      %28 = sbr.rel (%p26) target = $region8
    $region5: #{tpu_custom_call.1} parent=1 // loop_body
      %s30 = ssub.s32 %s25, 1
      %s31 = ssub.s32 %s25, 2
      %s38 = sadd.s32 1, %s33
      %p39 = scmp.ge.s32.totalorder %s38, 2
      %s40 = scalar_select %p39, 0, %s38
      %s41 = sadd.s32 1, %s32
      %s42 = scalar_select %p39, %s41, %s32
      %p43 = scmp.ge.s32.totalorder %s42, 2
      %s44 = scalar_select %p43, 0, %s42
      %s45 = ssub.s32 %s32, %s44
      %p46 = scmp.eq.s32.totalorder %s45, 0
      %s48 = sadd.s32 %s47, 1
      %s49 = scalar_select %p46, %s47, %s48
      %p52 = pneg %p46
      %p53 = scmp.eq.s32.totalorder %s25, 3
      %p54 = por %p52, %p53
      %p55 = scmp.ne.s32.totalorder %s47, %s50
      %p56 = scmp.eq.s32.totalorder %s25, 0
      %p57 = por %p55, %p56
      %p58 = scmp.ne.s32.totalorder %s47, %s50
      %p59 = scmp.eq.s32.totalorder %s30, 3
      %p60 = por %p58, %p59
      %p61 = scmp.ne.s32.totalorder %s50, %s51
      %p62 = scmp.eq.s32.totalorder %s30, 0
      %p63 = por %p61, %p62
      %p64 = scmp.ne.s32.totalorder %s50, %s51
      %p65 = scmp.eq.s32.totalorder %s31, 3
      %p66 = por %p64, %p65
      %p68 = scmp.ne.s32.totalorder %s51, %s67
      %p69 = scmp.eq.s32.totalorder %s31, 0
      %p70 = por %p68, %p69
      %s71 = ssub.s32 %s33, %s40
      %p72 = scmp.eq.s32.totalorder %s71, 0
      %s74 = sadd.s32 %s73, 1
      %s75 = scalar_select %p72, %s73, %s74
      %p78 = pneg %p72
      %p79 = scmp.eq.s32.totalorder %s25, 3
      %p80 = por %p78, %p79
      %p81 = scmp.ne.s32.totalorder %s73, %s76
      %p82 = scmp.eq.s32.totalorder %s25, 0
      %p83 = por %p81, %p82
      %p84 = scmp.ne.s32.totalorder %s73, %s76
      %p85 = scmp.eq.s32.totalorder %s30, 3
      %p86 = por %p84, %p85
      %p87 = scmp.ne.s32.totalorder %s76, %s77
      %p88 = scmp.eq.s32.totalorder %s30, 0
      %p89 = por %p87, %p88
      %p90 = scmp.ne.s32.totalorder %s76, %s77
      %p91 = scmp.eq.s32.totalorder %s31, 3
      %p92 = por %p90, %p91
      %p94 = scmp.ne.s32.totalorder %s77, %s93
      %p95 = scmp.eq.s32.totalorder %s31, 0
      %p96 = por %p94, %p95
      %s97 = ssub.s32 %s33, %s40
      %p98 = scmp.eq.s32.totalorder %s97, 0
      %s100 = sadd.s32 %s99, 1
      %s101 = scalar_select %p98, %s99, %s100
      %p104 = pneg %p98
      %p105 = scmp.eq.s32.totalorder %s25, 3
      %p106 = por %p104, %p105
      %p107 = scmp.ne.s32.totalorder %s99, %s102
      %p108 = scmp.eq.s32.totalorder %s25, 0
      %p109 = por %p107, %p108
      %p110 = scmp.ne.s32.totalorder %s99, %s102
      %p111 = scmp.eq.s32.totalorder %s30, 3
      %p112 = por %p110, %p111
      %p113 = scmp.ne.s32.totalorder %s102, %s103
      %p114 = scmp.eq.s32.totalorder %s30, 0
      %p115 = por %p113, %p114
      %p116 = scmp.ne.s32.totalorder %s102, %s103
      %p117 = scmp.eq.s32.totalorder %s31, 3
      %p118 = por %p116, %p117
      %p120 = scmp.ne.s32.totalorder %s103, %s119
      %p121 = scmp.eq.s32.totalorder %s31, 0
      %p122 = por %p120, %p121
      %s123 = ssub.s32 %s33, %s40
      %p124 = scmp.eq.s32.totalorder %s123, 0
      %s126 = sadd.s32 %s125, 1
      %s127 = scalar_select %p124, %s125, %s126
      %p130 = pneg %p124
      %p131 = scmp.eq.s32.totalorder %s25, 3
      %p132 = por %p130, %p131
      %p133 = scmp.ne.s32.totalorder %s125, %s128
      %p134 = scmp.eq.s32.totalorder %s25, 0
      %p135 = por %p133, %p134
      %p136 = scmp.ne.s32.totalorder %s125, %s128
      %p137 = scmp.eq.s32.totalorder %s30, 3
      %p138 = por %p136, %p137
      %p139 = scmp.ne.s32.totalorder %s128, %s129
      %p140 = scmp.eq.s32.totalorder %s30, 0
      %p141 = por %p139, %p140
      %p142 = scmp.ne.s32.totalorder %s128, %s129
      %p143 = scmp.eq.s32.totalorder %s31, 3
      %p144 = por %p142, %p143
      %p146 = scmp.ne.s32.totalorder %s129, %s145
      %p147 = scmp.eq.s32.totalorder %s31, 0
      %p148 = por %p146, %p147
      %s149 = ssub.s32 %s33, %s40
      %p150 = scmp.eq.s32.totalorder %s149, 0
      %s152 = sadd.s32 %s151, 1
      %s153 = scalar_select %p150, %s151, %s152
      %p156 = pneg %p150
      %p157 = scmp.eq.s32.totalorder %s25, 3
      %p158 = por %p156, %p157
      %p159 = scmp.ne.s32.totalorder %s151, %s154
      %p160 = scmp.eq.s32.totalorder %s25, 0
      %p161 = por %p159, %p160
      %p162 = scmp.ne.s32.totalorder %s151, %s154
      %p163 = scmp.eq.s32.totalorder %s30, 3
      %p164 = por %p162, %p163
      %p165 = scmp.ne.s32.totalorder %s154, %s155
      %p166 = scmp.eq.s32.totalorder %s30, 0
      %p167 = por %p165, %p166
      %p168 = scmp.ne.s32.totalorder %s154, %s155
      %p169 = scmp.eq.s32.totalorder %s31, 3
      %p170 = por %p168, %p169
      %p172 = scmp.ne.s32.totalorder %s155, %s171
      %p173 = scmp.eq.s32.totalorder %s31, 0
      %p174 = por %p172, %p173
      %s175 = ssub.s32 %s33, %s40
      %p176 = scmp.eq.s32.totalorder %s175, 0
      %s178 = sadd.s32 %s177, 1
      %s179 = scalar_select %p176, %s177, %s178
      %p182 = pneg %p176
      %p183 = scmp.eq.s32.totalorder %s25, 3
      %p184 = por %p182, %p183
      %p185 = scmp.ne.s32.totalorder %s177, %s180
      %p186 = scmp.eq.s32.totalorder %s25, 0
      %p187 = por %p185, %p186
      %p188 = scmp.ne.s32.totalorder %s177, %s180
      %p189 = scmp.eq.s32.totalorder %s30, 3
      %p190 = por %p188, %p189
      %p191 = scmp.ne.s32.totalorder %s180, %s181
      %p192 = scmp.eq.s32.totalorder %s30, 0
      %p193 = por %p191, %p192
      %p194 = scmp.ne.s32.totalorder %s180, %s181
      %p195 = scmp.eq.s32.totalorder %s31, 3
      %p196 = por %p194, %p195
      %p198 = scmp.ne.s32.totalorder %s181, %s197
      %p199 = scmp.eq.s32.totalorder %s31, 0
      %p200 = por %p198, %p199
      %s201 = ssub.s32 %s33, %s40
      %p202 = scmp.eq.s32.totalorder %s201, 0
      %s204 = sadd.s32 %s203, 1
      %s205 = scalar_select %p202, %s203, %s204
      %p208 = pneg %p202
      %p209 = scmp.eq.s32.totalorder %s25, 3
      %p210 = por %p208, %p209
      %p211 = scmp.ne.s32.totalorder %s203, %s206
      %p212 = scmp.eq.s32.totalorder %s25, 0
      %p213 = por %p211, %p212
      %p214 = scmp.ne.s32.totalorder %s203, %s206
      %p215 = scmp.eq.s32.totalorder %s30, 3
      %p216 = por %p214, %p215
      %p217 = scmp.ne.s32.totalorder %s206, %s207
      %p218 = scmp.eq.s32.totalorder %s30, 0
      %p219 = por %p217, %p218
      %p220 = scmp.ne.s32.totalorder %s206, %s207
      %p221 = scmp.eq.s32.totalorder %s31, 3
      %p222 = por %p220, %p221
      %p224 = scmp.ne.s32.totalorder %s207, %s223
      %p225 = scmp.eq.s32.totalorder %s31, 0
      %p226 = por %p224, %p225
      %s227 = ssub.s32 %s33, %s40
      %p228 = scmp.eq.s32.totalorder %s227, 0
      %s230 = sadd.s32 %s229, 1
      %s231 = scalar_select %p228, %s229, %s230
      %p234 = pneg %p228
      %p235 = scmp.eq.s32.totalorder %s25, 3
      %p236 = por %p234, %p235
      %p237 = scmp.ne.s32.totalorder %s229, %s232
      %p238 = scmp.eq.s32.totalorder %s25, 0
      %p239 = por %p237, %p238
      %p240 = scmp.ne.s32.totalorder %s229, %s232
      %p241 = scmp.eq.s32.totalorder %s30, 3
      %p242 = por %p240, %p241
      %p243 = scmp.ne.s32.totalorder %s232, %s233
      %p244 = scmp.eq.s32.totalorder %s30, 0
      %p245 = por %p243, %p244
      %p246 = scmp.ne.s32.totalorder %s232, %s233
      %p247 = scmp.eq.s32.totalorder %s31, 3
      %p248 = por %p246, %p247
      %p250 = scmp.ne.s32.totalorder %s233, %s249
      %p251 = scmp.eq.s32.totalorder %s31, 0
      %p252 = por %p250, %p251
      %s253 = ssub.s32 %s33, %s40
      %p254 = scmp.eq.s32.totalorder %s253, 0
      %s256 = sadd.s32 %s255, 1
      %s257 = scalar_select %p254, %s255, %s256
      %p260 = pneg %p254
      %p261 = scmp.eq.s32.totalorder %s25, 3
      %p262 = por %p260, %p261
      %p263 = scmp.ne.s32.totalorder %s255, %s258
      %p264 = scmp.eq.s32.totalorder %s25, 0
      %p265 = por %p263, %p264
      %p266 = scmp.ne.s32.totalorder %s255, %s258
      %p267 = scmp.eq.s32.totalorder %s30, 3
      %p268 = por %p266, %p267
      %p269 = scmp.ne.s32.totalorder %s258, %s259
      %p270 = scmp.eq.s32.totalorder %s30, 0
      %p271 = por %p269, %p270
      %p272 = scmp.ne.s32.totalorder %s258, %s259
      %p273 = scmp.eq.s32.totalorder %s31, 3
      %p274 = por %p272, %p273
      %p276 = scmp.ne.s32.totalorder %s259, %s275
      %p277 = scmp.eq.s32.totalorder %s31, 0
      %p278 = por %p276, %p277
      %s279 = ssub.s32 %s33, %s40
      %p280 = scmp.eq.s32.totalorder %s279, 0
      %s282 = sadd.s32 %s281, 1
      %s283 = scalar_select %p280, %s281, %s282
      %p286 = pneg %p280
      %p287 = scmp.eq.s32.totalorder %s25, 3
      %p288 = por %p286, %p287
      %p289 = scmp.ne.s32.totalorder %s281, %s284
      %p290 = scmp.eq.s32.totalorder %s25, 0
      %p291 = por %p289, %p290
      %p292 = scmp.ne.s32.totalorder %s281, %s284
      %p293 = scmp.eq.s32.totalorder %s30, 3
      %p294 = por %p292, %p293
      %p295 = scmp.ne.s32.totalorder %s284, %s285
      %p296 = scmp.eq.s32.totalorder %s30, 0
      %p297 = por %p295, %p296
      %p298 = scmp.ne.s32.totalorder %s284, %s285
      %p299 = scmp.eq.s32.totalorder %s31, 3
      %p300 = por %p298, %p299
      %p302 = scmp.ne.s32.totalorder %s285, %s301
      %p303 = scmp.eq.s32.totalorder %s31, 0
      %p304 = por %p302, %p303
      %s305 = ssub.s32 %s33, %s40
      %p306 = scmp.eq.s32.totalorder %s305, 0
      %s308 = sadd.s32 %s307, 1
      %s309 = scalar_select %p306, %s307, %s308
      %p312 = pneg %p306
      %p313 = scmp.eq.s32.totalorder %s25, 3
      %p314 = por %p312, %p313
      %p315 = scmp.ne.s32.totalorder %s307, %s310
      %p316 = scmp.eq.s32.totalorder %s25, 0
      %p317 = por %p315, %p316
      %p318 = scmp.ne.s32.totalorder %s307, %s310
      %p319 = scmp.eq.s32.totalorder %s30, 3
      %p320 = por %p318, %p319
      %p321 = scmp.ne.s32.totalorder %s310, %s311
      %p322 = scmp.eq.s32.totalorder %s30, 0
      %p323 = por %p321, %p322
      %p324 = scmp.ne.s32.totalorder %s310, %s311
      %p325 = scmp.eq.s32.totalorder %s31, 3
      %p326 = por %p324, %p325
      %p328 = scmp.ne.s32.totalorder %s311, %s327
      %p329 = scmp.eq.s32.totalorder %s31, 0
      %p330 = por %p328, %p329
      %s331 = ssub.s32 %s33, %s40
      %p332 = scmp.eq.s32.totalorder %s331, 0
      %s334 = sadd.s32 %s333, 1
      %s335 = scalar_select %p332, %s333, %s334
      %p338 = pneg %p332
      %p339 = scmp.eq.s32.totalorder %s25, 3
      %p340 = por %p338, %p339
      %p341 = scmp.ne.s32.totalorder %s333, %s336
      %p342 = scmp.eq.s32.totalorder %s25, 0
      %p343 = por %p341, %p342
      %p344 = scmp.ne.s32.totalorder %s333, %s336
      %p345 = scmp.eq.s32.totalorder %s30, 3
      %p346 = por %p344, %p345
      %p347 = scmp.ne.s32.totalorder %s336, %s337
      %p348 = scmp.eq.s32.totalorder %s30, 0
      %p349 = por %p347, %p348
      %p350 = scmp.ne.s32.totalorder %s336, %s337
      %p351 = scmp.eq.s32.totalorder %s31, 3
      %p352 = por %p350, %p351
      %p354 = scmp.ne.s32.totalorder %s337, %s353
      %p355 = scmp.eq.s32.totalorder %s31, 0
      %p356 = por %p354, %p355
      %s358 = sadd.s32 %s357, 1
      %p361 = scmp.eq.s32.totalorder %s25, 3
      %p362 = scmp.ne.s32.totalorder %s357, %s359
      %p363 = scmp.eq.s32.totalorder %s25, 0
      %p364 = por %p362, %p363
      %p365 = scmp.ne.s32.totalorder %s357, %s359
      %p366 = scmp.eq.s32.totalorder %s30, 3
      %p367 = por %p365, %p366
      %p368 = scmp.ne.s32.totalorder %s359, %s360
      %p369 = scmp.eq.s32.totalorder %s30, 0
      %p370 = por %p368, %p369
      %p371 = scmp.ne.s32.totalorder %s359, %s360
      %p372 = scmp.eq.s32.totalorder %s31, 3
      %p373 = por %p371, %p372
      %p375 = scmp.ne.s32.totalorder %s360, %s374
      %p376 = scmp.eq.s32.totalorder %s31, 0
      %p377 = por %p375, %p376
      %s379 = sadd.s32 %s378, 1
      %p382 = scmp.eq.s32.totalorder %s25, 3
      %p383 = scmp.ne.s32.totalorder %s378, %s380
      %p384 = scmp.eq.s32.totalorder %s25, 0
      %p385 = por %p383, %p384
      %p386 = scmp.ne.s32.totalorder %s378, %s380
      %p387 = scmp.eq.s32.totalorder %s30, 3
      %p388 = por %p386, %p387
      %p389 = scmp.ne.s32.totalorder %s380, %s381
      %p390 = scmp.eq.s32.totalorder %s30, 0
      %p391 = por %p389, %p390
      %p392 = scmp.ne.s32.totalorder %s380, %s381
      %p393 = scmp.eq.s32.totalorder %s31, 3
      %p394 = por %p392, %p393
      %p396 = scmp.ne.s32.totalorder %s381, %s395
      %p397 = scmp.eq.s32.totalorder %s31, 0
      %p398 = por %p396, %p397
      %s400 = sadd.s32 %s399, 1
      %p403 = scmp.eq.s32.totalorder %s25, 3
      %p404 = scmp.ne.s32.totalorder %s399, %s401
      %p405 = scmp.eq.s32.totalorder %s25, 0
      %p406 = por %p404, %p405
      %p407 = scmp.ne.s32.totalorder %s399, %s401
      %p408 = scmp.eq.s32.totalorder %s30, 3
      %p409 = por %p407, %p408
      %p410 = scmp.ne.s32.totalorder %s401, %s402
      %p411 = scmp.eq.s32.totalorder %s30, 0
      %p412 = por %p410, %p411
      %p413 = scmp.ne.s32.totalorder %s401, %s402
      %p414 = scmp.eq.s32.totalorder %s31, 3
      %p415 = por %p413, %p414
      %p417 = scmp.ne.s32.totalorder %s402, %s416
      %p418 = scmp.eq.s32.totalorder %s31, 0
      %p419 = por %p417, %p418
      %s421 = sadd.s32 %s420, 1
      %p424 = scmp.eq.s32.totalorder %s25, 3
      %p425 = scmp.ne.s32.totalorder %s420, %s422
      %p426 = scmp.eq.s32.totalorder %s25, 0
      %p427 = por %p425, %p426
      %p428 = scmp.ne.s32.totalorder %s420, %s422
      %p429 = scmp.eq.s32.totalorder %s30, 3
      %p430 = por %p428, %p429
      %p431 = scmp.ne.s32.totalorder %s422, %s423
      %p432 = scmp.eq.s32.totalorder %s30, 0
      %p433 = por %p431, %p432
      %p434 = scmp.ne.s32.totalorder %s422, %s423
      %p435 = scmp.eq.s32.totalorder %s31, 3
      %p436 = por %p434, %p435
      %p438 = scmp.ne.s32.totalorder %s423, %s437
      %p439 = scmp.eq.s32.totalorder %s31, 0
      %p440 = por %p438, %p439
      %s441 = ssub.s32 %s32, %s44
      %p442 = scmp.eq.s32.totalorder %s441, 0
      %s444 = sadd.s32 %s443, 1
      %s445 = scalar_select %p442, %s443, %s444
      %p448 = pneg %p442
      %p449 = scmp.eq.s32.totalorder %s25, 3
      %p450 = por %p448, %p449
      %p451 = scmp.ne.s32.totalorder %s443, %s446
      %p452 = scmp.eq.s32.totalorder %s25, 0
      %p453 = por %p451, %p452
      %p454 = scmp.ne.s32.totalorder %s443, %s446
      %p455 = scmp.eq.s32.totalorder %s30, 3
      %p456 = por %p454, %p455
      %p457 = scmp.ne.s32.totalorder %s446, %s447
      %p458 = scmp.eq.s32.totalorder %s30, 0
      %p459 = por %p457, %p458
      %p460 = scmp.ne.s32.totalorder %s446, %s447
      %p461 = scmp.eq.s32.totalorder %s31, 3
      %p462 = por %p460, %p461
      %p464 = scmp.ne.s32.totalorder %s447, %s463
      %p465 = scmp.eq.s32.totalorder %s31, 0
      %p466 = por %p464, %p465
      %p467 = scmp.le.s32.totalorder 1, %s25
      %p468 = scmp.lt.s32.totalorder %s25, 5
      %p469 = pnand %p467, %p468
      %p470 = pneg %p469
      // Predicated region
      $region9: #{tpu_custom_call.1} parent=5 // pred_check
        _
      $region10: #{tpu_custom_call.1} parent=5 // pred_check_branch
        %472 = sbr.rel (%p469) target = $region12
      $region11: #{tpu_custom_call.1} parent=5 // pred_region
        %s473 = ssub.s32 %s25, 1
        // Predicated region
        $region13: #{tpu_custom_call.1} parent=11 // pred_check
          %p474 = pneg %p370
        $region14: #{tpu_custom_call.1} parent=11 // pred_check_branch
          %476 = sbr.rel (%p474) target = $region16
        $region15: #{tpu_custom_call.1} parent=11 // pred_region
          _
        $region16: #{tpu_custom_call.1} parent=11 // pred_fallthru
          _
        // Predicated region
        $region17: #{tpu_custom_call.1} parent=11 // pred_check
          %p477 = pneg %p391
        $region18: #{tpu_custom_call.1} parent=11 // pred_check_branch
          %479 = sbr.rel (%p477) target = $region20
        $region19: #{tpu_custom_call.1} parent=11 // pred_region
          _
        $region20: #{tpu_custom_call.1} parent=11 // pred_fallthru
          _
        // Predicated region
        $region21: #{tpu_custom_call.1} parent=11 // pred_check
          %p480 = pneg %p412
        $region22: #{tpu_custom_call.1} parent=11 // pred_check_branch
          %482 = sbr.rel (%p480) target = $region24
        $region23: #{tpu_custom_call.1} parent=11 // pred_region
          _
        $region24: #{tpu_custom_call.1} parent=11 // pred_fallthru
          _
        // Predicated region
        $region25: #{tpu_custom_call.1} parent=11 // pred_check
          %p483 = pneg %p433
        $region26: #{tpu_custom_call.1} parent=11 // pred_check_branch
          %485 = sbr.rel (%p483) target = $region28
        $region27: #{tpu_custom_call.1} parent=11 // pred_region
          _
        $region28: #{tpu_custom_call.1} parent=11 // pred_fallthru
          _
      $region12: #{tpu_custom_call.1} parent=5 // pred_fallthru
        _
      %p486 = scmp.lt.s32.totalorder %s25, 4
      // Predicated region
      $region29: #{tpu_custom_call.1} parent=5 // pred_check
        %p487 = pneg %p486
      $region30: #{tpu_custom_call.1} parent=5 // pred_check_branch
        %489 = sbr.rel (%p487) target = $region32
      $region31: #{tpu_custom_call.1} parent=5 // pred_region
        // Predicated region
        $region33: #{tpu_custom_call.1} parent=31 // pred_check
          %p490 = pneg %p57
        $region34: #{tpu_custom_call.1} parent=31 // pred_check_branch
          %492 = sbr.rel (%p490) target = $region36
        $region35: #{tpu_custom_call.1} parent=31 // pred_region
          %p493 = scmp.lt.s32.totalorder %s32, 1
          %s494 = scalar_select %p493, %s32, 1
          %s495 = smul.addr %s494, 8
          %s496 = scalar_lea.vmem %s0, %s495
        $region36: #{tpu_custom_call.1} parent=31 // pred_fallthru
          _
        // Predicated region
        $region37: #{tpu_custom_call.1} parent=31 // pred_check
          %p497 = pneg %p83
        $region38: #{tpu_custom_call.1} parent=31 // pred_check_branch
          %499 = sbr.rel (%p497) target = $region40
        $region39: #{tpu_custom_call.1} parent=31 // pred_region
          %p500 = scmp.lt.s32.totalorder %s33, 1
          %s501 = scalar_select %p500, %s33, 1
          %s502 = scalar_lea.vmem %s1, %s501
        $region40: #{tpu_custom_call.1} parent=31 // pred_fallthru
          _
        // Predicated region
        $region41: #{tpu_custom_call.1} parent=31 // pred_check
          %p503 = pneg %p109
        $region42: #{tpu_custom_call.1} parent=31 // pred_check_branch
          %505 = sbr.rel (%p503) target = $region44
        $region43: #{tpu_custom_call.1} parent=31 // pred_region
          %p506 = scmp.lt.s32.totalorder %s33, 1
          %s507 = scalar_select %p506, %s33, 1
          %s508 = scalar_lea.vmem %s2, %s507
        $region44: #{tpu_custom_call.1} parent=31 // pred_fallthru
          _
        // Predicated region
        $region45: #{tpu_custom_call.1} parent=31 // pred_check
          %p509 = pneg %p135
        $region46: #{tpu_custom_call.1} parent=31 // pred_check_branch
          %511 = sbr.rel (%p509) target = $region48
        $region47: #{tpu_custom_call.1} parent=31 // pred_region
          %p512 = scmp.lt.s32.totalorder %s33, 1
          %s513 = scalar_select %p512, %s33, 1
          %s514 = smul.addr %s513, 16
          %s515 = smul.addr %s514, 4
          %s516 = scalar_lea.vmem %s3, %s515
        $region48: #{tpu_custom_call.1} parent=31 // pred_fallthru
          _
        // Predicated region
        $region49: #{tpu_custom_call.1} parent=31 // pred_check
          %p517 = pneg %p161
        $region50: #{tpu_custom_call.1} parent=31 // pred_check_branch
          %519 = sbr.rel (%p517) target = $region52
        $region51: #{tpu_custom_call.1} parent=31 // pred_region
          %p520 = scmp.lt.s32.totalorder %s33, 1
          %s521 = scalar_select %p520, %s33, 1
          %s522 = smul.addr %s521, 4
          %s523 = smul.addr %s522, 4
          %s524 = scalar_lea.vmem %s4, %s523
        $region52: #{tpu_custom_call.1} parent=31 // pred_fallthru
          _
        // Predicated region
        $region53: #{tpu_custom_call.1} parent=31 // pred_check
          %p525 = pneg %p187
        $region54: #{tpu_custom_call.1} parent=31 // pred_check_branch
          %527 = sbr.rel (%p525) target = $region56
        $region55: #{tpu_custom_call.1} parent=31 // pred_region
          %p528 = scmp.lt.s32.totalorder %s33, 1
          %s529 = scalar_select %p528, %s33, 1
          %s530 = scalar_lea.vmem %s5, %s529
        $region56: #{tpu_custom_call.1} parent=31 // pred_fallthru
          _
        // Predicated region
        $region57: #{tpu_custom_call.1} parent=31 // pred_check
          %p531 = pneg %p213
        $region58: #{tpu_custom_call.1} parent=31 // pred_check_branch
          %533 = sbr.rel (%p531) target = $region60
        $region59: #{tpu_custom_call.1} parent=31 // pred_region
          %p534 = scmp.lt.s32.totalorder %s33, 1
          %s535 = scalar_select %p534, %s33, 1
          %s536 = scalar_lea.vmem %s6, %s535
        $region60: #{tpu_custom_call.1} parent=31 // pred_fallthru
          _
        // Predicated region
        $region61: #{tpu_custom_call.1} parent=31 // pred_check
          %p537 = pneg %p239
        $region62: #{tpu_custom_call.1} parent=31 // pred_check_branch
          %539 = sbr.rel (%p537) target = $region64
        $region63: #{tpu_custom_call.1} parent=31 // pred_region
          %p540 = scmp.lt.s32.totalorder %s33, 1
          %s541 = scalar_select %p540, %s33, 1
          %s542 = scalar_lea.vmem %s7, %s541
        $region64: #{tpu_custom_call.1} parent=31 // pred_fallthru
          _
        // Predicated region
        $region65: #{tpu_custom_call.1} parent=31 // pred_check
          %p543 = pneg %p265
        $region66: #{tpu_custom_call.1} parent=31 // pred_check_branch
          %545 = sbr.rel (%p543) target = $region68
        $region67: #{tpu_custom_call.1} parent=31 // pred_region
          %p546 = scmp.lt.s32.totalorder %s33, 1
          %s547 = scalar_select %p546, %s33, 1
          %s548 = smul.addr %s547, 4
          %s549 = smul.addr %s548, 4
          %s550 = scalar_lea.vmem %s8, %s549
        $region68: #{tpu_custom_call.1} parent=31 // pred_fallthru
          _
        // Predicated region
        $region69: #{tpu_custom_call.1} parent=31 // pred_check
          %p551 = pneg %p291
        $region70: #{tpu_custom_call.1} parent=31 // pred_check_branch
          %553 = sbr.rel (%p551) target = $region72
        $region71: #{tpu_custom_call.1} parent=31 // pred_region
          %p554 = scmp.lt.s32.totalorder %s33, 1
          %s555 = scalar_select %p554, %s33, 1
          %s556 = scalar_lea.vmem %s9, %s555
        $region72: #{tpu_custom_call.1} parent=31 // pred_fallthru
          _
        // Predicated region
        $region73: #{tpu_custom_call.1} parent=31 // pred_check
          %p557 = pneg %p317
        $region74: #{tpu_custom_call.1} parent=31 // pred_check_branch
          %559 = sbr.rel (%p557) target = $region76
        $region75: #{tpu_custom_call.1} parent=31 // pred_region
          %p560 = scmp.lt.s32.totalorder %s33, 1
          %s561 = scalar_select %p560, %s33, 1
          %s562 = smul.addr %s561, 16
          %s563 = smul.addr %s562, 4
          %s564 = scalar_lea.vmem %s10, %s563
        $region76: #{tpu_custom_call.1} parent=31 // pred_fallthru
          _
        // Predicated region
        $region77: #{tpu_custom_call.1} parent=31 // pred_check
          %p565 = pneg %p343
        $region78: #{tpu_custom_call.1} parent=31 // pred_check_branch
          %567 = sbr.rel (%p565) target = $region80
        $region79: #{tpu_custom_call.1} parent=31 // pred_region
          %p568 = scmp.lt.s32.totalorder %s33, 1
          %s569 = scalar_select %p568, %s33, 1
          %s570 = scalar_lea.vmem %s11, %s569
        $region80: #{tpu_custom_call.1} parent=31 // pred_fallthru
          _
      $region32: #{tpu_custom_call.1} parent=5 // pred_fallthru
        _
      %p571 = scmp.le.s32.totalorder 1, %s25
      %p572 = scmp.lt.s32.totalorder %s25, 5
      %p573 = pnand %p571, %p572
      %p574 = pneg %p573
      // Predicated region
      $region81: #{tpu_custom_call.1} parent=5 // pred_check
        _
      $region82: #{tpu_custom_call.1} parent=5 // pred_check_branch
        %576 = sbr.rel (%p573) target = $region84
      $region83: #{tpu_custom_call.1} parent=5 // pred_region
        %s577 = ssub.s32 %s25, 1
        %p578 = scmp.lt.s32.totalorder %s34, 1
        %s579 = scalar_select %p578, %s34, 1
        %s580 = smul.addr %s579, 8
        %s581 = scalar_lea.vmem %s0, %s580
        %p582 = pneg %p63
        %p583 = pneg %p60
        %p584 = scmp.lt.s32.totalorder %s35, 1
        %s585 = scalar_select %p584, %s35, 1
        %s586 = scalar_lea.vmem %s1, %s585
        %p587 = pneg %p89
        %p588 = pneg %p86
        %p589 = scmp.lt.s32.totalorder %s35, 1
        %s590 = scalar_select %p589, %s35, 1
        %s591 = scalar_lea.vmem %s2, %s590
        %p592 = pneg %p115
        %p593 = pneg %p112
        %p594 = scmp.lt.s32.totalorder %s35, 1
        %s595 = scalar_select %p594, %s35, 1
        %s596 = smul.addr %s595, 16
        %s597 = smul.addr %s596, 4
        %s598 = scalar_lea.vmem %s3, %s597
        %p599 = pneg %p141
        %p600 = pneg %p138
        %p601 = scmp.lt.s32.totalorder %s35, 1
        %s602 = scalar_select %p601, %s35, 1
        %s603 = smul.addr %s602, 4
        %s604 = smul.addr %s603, 4
        %s605 = scalar_lea.vmem %s4, %s604
        %p606 = pneg %p167
        %p607 = pneg %p164
        %p608 = scmp.lt.s32.totalorder %s35, 1
        %s609 = scalar_select %p608, %s35, 1
        %s610 = scalar_lea.vmem %s5, %s609
        %p611 = pneg %p193
        %p612 = pneg %p190
        %p613 = scmp.lt.s32.totalorder %s35, 1
        %s614 = scalar_select %p613, %s35, 1
        %s615 = scalar_lea.vmem %s6, %s614
        %p616 = pneg %p219
        %p617 = pneg %p216
        %p618 = scmp.lt.s32.totalorder %s35, 1
        %s619 = scalar_select %p618, %s35, 1
        %s620 = scalar_lea.vmem %s7, %s619
        %p621 = pneg %p245
        %p622 = pneg %p242
        %p623 = scmp.lt.s32.totalorder %s35, 1
        %s624 = scalar_select %p623, %s35, 1
        %s625 = smul.addr %s624, 4
        %s626 = smul.addr %s625, 4
        %s627 = scalar_lea.vmem %s8, %s626
        %p628 = pneg %p271
        %p629 = pneg %p268
        %p630 = scmp.lt.s32.totalorder %s35, 1
        %s631 = scalar_select %p630, %s35, 1
        %s632 = scalar_lea.vmem %s9, %s631
        %p633 = pneg %p297
        %p634 = pneg %p294
        %p635 = scmp.lt.s32.totalorder %s35, 1
        %s636 = scalar_select %p635, %s35, 1
        %s637 = smul.addr %s636, 16
        %s638 = smul.addr %s637, 4
        %s639 = scalar_lea.vmem %s10, %s638
        %p640 = pneg %p323
        %p641 = pneg %p320
        %p642 = scmp.lt.s32.totalorder %s35, 1
        %s643 = scalar_select %p642, %s35, 1
        %s644 = scalar_lea.vmem %s11, %s643
        %p645 = pneg %p349
        %p646 = pneg %p346
        %p647 = pneg %p370
        %p648 = pneg %p367
        %p649 = pneg %p391
        %p650 = pneg %p388
        %p651 = pneg %p412
        %p652 = pneg %p409
        %p653 = pneg %p433
        %p654 = pneg %p430
        %p655 = pneg %p459
        %p656 = pneg %p456
        %s657 = sand.u32 %s446, 1
        %s658 = scalar_lea.sflag [#allocation4], %s657
        %s659 = sand.u32 %s446, 1
        %s660 = smul.addr %s659, 4
        %s661 = scalar_lea.vmem [#allocation3], %s660
        %p662 = scmp.lt.s32.totalorder %s34, 1
        %s663 = scalar_select %p662, %s34, 1
        %s664 = smul.addr %s663, 8
        %s665 = scalar_lea.vmem %s0, %s664
        %p666 = scmp.lt.s32.totalorder %s35, 1
        %s667 = scalar_select %p666, %s35, 1
        %s668 = scalar_lea.vmem %s1, %s667
        %p669 = scmp.lt.s32.totalorder %s35, 1
        %s670 = scalar_select %p669, %s35, 1
        %s671 = scalar_lea.vmem %s2, %s670
        %p672 = scmp.lt.s32.totalorder %s35, 1
        %s673 = scalar_select %p672, %s35, 1
        %s674 = smul.addr %s673, 16
        %s675 = smul.addr %s674, 4
        %s676 = scalar_lea.vmem %s3, %s675
        %p677 = scmp.lt.s32.totalorder %s35, 1
        %s678 = scalar_select %p677, %s35, 1
        %s679 = smul.addr %s678, 4
        %s680 = smul.addr %s679, 4
        %s681 = scalar_lea.vmem %s4, %s680
        %p682 = scmp.lt.s32.totalorder %s35, 1
        %s683 = scalar_select %p682, %s35, 1
        %s684 = scalar_lea.vmem %s5, %s683
        %p685 = scmp.lt.s32.totalorder %s35, 1
        %s686 = scalar_select %p685, %s35, 1
        %s687 = scalar_lea.vmem %s6, %s686
        %p688 = scmp.lt.s32.totalorder %s35, 1
        %s689 = scalar_select %p688, %s35, 1
        %s690 = scalar_lea.vmem %s7, %s689
        %p691 = scmp.lt.s32.totalorder %s35, 1
        %s692 = scalar_select %p691, %s35, 1
        %s693 = smul.addr %s692, 4
        %s694 = smul.addr %s693, 4
        %s695 = scalar_lea.vmem %s8, %s694
        %p696 = scmp.lt.s32.totalorder %s35, 1
        %s697 = scalar_select %p696, %s35, 1
        %s698 = scalar_lea.vmem %s9, %s697
        %p699 = scmp.lt.s32.totalorder %s35, 1
        %s700 = scalar_select %p699, %s35, 1
        %s701 = smul.addr %s700, 16
        %s702 = smul.addr %s701, 4
        %s703 = scalar_lea.vmem %s10, %s702
        %p704 = scmp.lt.s32.totalorder %s35, 1
        %s705 = scalar_select %p704, %s35, 1
        %s706 = scalar_lea.vmem %s11, %s705
        %p708 = scmp.eq.s32.totalorder %s35, 0
        // Predicated region
        $region85: #{tpu_custom_call.1} parent=83 // pred_check
          %p709 = pneg %p708
        $region86: #{tpu_custom_call.1} parent=83 // pred_check_branch
          %711 = sbr.rel (%p709) target = $region88
        $region87: #{tpu_custom_call.1} parent=83 // pred_region
          %v712 = vld [vmem:[%s665] sm:$0xff]
          %vm713 = vcmask 261120
          %714 = vst.msk [vmem:[#allocation2] sm:$0xff] %vm713, %v712
        $region88: #{tpu_custom_call.1} parent=83 // pred_fallthru
          _
        %v715 = vld [vmem:[#allocation2] sm:$0xff]
        %v716 = vld [vmem:[%s668] sm:$0x1]
        %v717 = vld [vmem:[%s671] sm:$0x1]
        %vm718 = vcmask 261120
        %v719 = vsel %vm718, %v715, 0.0
        %720 = vadd.xlane.f32.xlu0 %v719
        %v721 = vpop.xlane.xlu0 %720
        %v722 = vrcp.pop 32.0
        %v723 = vmul.f32 32.0, %v722
        %v724 = vsub.f32 1.0, %v723
        %v725 = vmul.f32 %v722, %v724
        %v726 = vadd.f32 %v722, %v725
        %vm727 = vweird.f32 %v722
        %v728 = vsel %vm727, %v722, %v726
        %v729 = vmul.f32 %v721, %v728
        %v730 = vsub.f32 %v715, %v729
        %v731 = vmul.f32 %v730, %v730
        %v732 = vsel %vm718, %v731, 0.0
        %733 = vadd.xlane.f32.xlu0 %v732
        %v734 = vpop.xlane.xlu0 %733
        %v735 = vmul.f32 %v734, %v728
        %v736 = vadd.f32 %v735, 1e-05
        %v737 = vrsqrt.pop %v736
        %v738 = vmul.f32 %v737, %v736
        %v739 = vmul.f32 %v738, %v737
        %v740 = vmul.f32 0.5, %v739
        %v741 = vsub.f32 1.5, %v740
        %v742 = vmul.f32 %v737, %v741
        %vm743 = vweird.f32 %v736
        %vm744 = vweird.f32 %v737
        %vm745 = vmor %vm743, %vm744
        %v746 = vsel %vm745, %v737, %v742
        %v747 = vmul.f32 %v730, %v746
        %v749 = vperm.slane %v716, 0
        %v751 = vmul.f32 %v747, %v749
        %v753 = vperm.slane %v717, 0
        %v755 = vadd.f32 %v751, %v753
        %v756 = vpack.c.bf16 %v755, %v755
        %v757 = vld [vmem:[%s676] sm:$0xf]
        %v758 = vld [vmem:[%s676 + $0x4] sm:$0xf]
        %v759 = vld [vmem:[%s676 + $0x8] sm:$0xf]
        %v760 = vld [vmem:[%s676 + $0xc] sm:$0xf]
        %v761 = vld [vmem:[%s676 + $0x10] sm:$0xf]
        %v762 = vld [vmem:[%s676 + $0x14] sm:$0xf]
        %v763 = vld [vmem:[%s676 + $0x18] sm:$0xf]
        %v764 = vld [vmem:[%s676 + $0x1c] sm:$0xf]
        %v765 = vld [vmem:[%s676 + $0x20] sm:$0xf]
        %v766 = vld [vmem:[%s676 + $0x24] sm:$0xf]
        %v767 = vld [vmem:[%s676 + $0x28] sm:$0xf]
        %v768 = vld [vmem:[%s676 + $0x2c] sm:$0xf]
        %v769 = vld [vmem:[%s676 + $0x30] sm:$0xf]
        %v770 = vld [vmem:[%s676 + $0x34] sm:$0xf]
        %v771 = vld [vmem:[%s676 + $0x38] sm:$0xf]
        %v772 = vld [vmem:[%s676 + $0x3c] sm:$0xf]
        %v777 = vunpack.c.l.b16 %v757
        %v778 = vunpack.c.l.b16 %v758
        %v779 = vunpack.c.l.b16 %v759
        %v780 = vunpack.c.l.b16 %v760
        %v781 = vpack.c.b16 %v778, %v777
        %v782 = vpack.c.b16 %v780, %v779
        %v786 = vsel %vm718, %v756, 0
        %788 = vmatpush.bf16.msra.mxu0 0
        %789 = vmatpush.bf16.msra.mxu0 0
        %790 = vmatpush.bf16.msra.mxu0 0
        %791 = vmatpush.bf16.msra.mxu0 0
        %792 = vmatpush.bf16.msra.mxu0 0
        %793 = vmatpush.bf16.msra.mxu0 0
        %794 = vmatpush.bf16.msra.mxu0 %v782
        %795 = vmatpush.bf16.msra.mxu0 %v781
        %796 = vmatmul.bf16.gmra.mxu0 %v786
        %v797 = vpop.f32.mrf.mxu0
        %v798 = vadd.f32 0.0, %v797
        %v799 = vpop.f32.mrf.mxu0
        %800 = vdwg.mxu0
        %v805 = vunpack.c.l.b16 %v761
        %v806 = vunpack.c.l.b16 %v762
        %v807 = vunpack.c.l.b16 %v763
        %v808 = vunpack.c.l.b16 %v764
        %v809 = vpack.c.b16 %v806, %v805
        %v810 = vpack.c.b16 %v808, %v807
        %813 = vmatpush.bf16.msra.mxu0 0
        %814 = vmatpush.bf16.msra.mxu0 0
        %815 = vmatpush.bf16.msra.mxu0 0
        %816 = vmatpush.bf16.msra.mxu0 0
        %817 = vmatpush.bf16.msra.mxu0 0
        %818 = vmatpush.bf16.msra.mxu0 0
        %819 = vmatpush.bf16.msra.mxu0 %v810
        %820 = vmatpush.bf16.msra.mxu0 %v809
        %821 = vmatmul.bf16.gmra.mxu0 %v786
        %v822 = vpop.f32.mrf.mxu0
        %v823 = vadd.f32 0.0, %v822
        %v824 = vpop.f32.mrf.mxu0
        %825 = vdwg.mxu0
        %v830 = vunpack.c.l.b16 %v765
        %v831 = vunpack.c.l.b16 %v766
        %v832 = vunpack.c.l.b16 %v767
        %v833 = vunpack.c.l.b16 %v768
        %v834 = vpack.c.b16 %v831, %v830
        %v835 = vpack.c.b16 %v833, %v832
        %838 = vmatpush.bf16.msra.mxu0 0
        %839 = vmatpush.bf16.msra.mxu0 0
        %840 = vmatpush.bf16.msra.mxu0 0
        %841 = vmatpush.bf16.msra.mxu0 0
        %842 = vmatpush.bf16.msra.mxu0 0
        %843 = vmatpush.bf16.msra.mxu0 0
        %844 = vmatpush.bf16.msra.mxu0 %v835
        %845 = vmatpush.bf16.msra.mxu0 %v834
        %846 = vmatmul.bf16.gmra.mxu0 %v786
        %v847 = vpop.f32.mrf.mxu0
        %v848 = vadd.f32 0.0, %v847
        %v849 = vpop.f32.mrf.mxu0
        %850 = vdwg.mxu0
        %v855 = vunpack.c.l.b16 %v769
        %v856 = vunpack.c.l.b16 %v770
        %v857 = vunpack.c.l.b16 %v771
        %v858 = vunpack.c.l.b16 %v772
        %v859 = vpack.c.b16 %v856, %v855
        %v860 = vpack.c.b16 %v858, %v857
        %863 = vmatpush.bf16.msra.mxu0 0
        %864 = vmatpush.bf16.msra.mxu0 0
        %865 = vmatpush.bf16.msra.mxu0 0
        %866 = vmatpush.bf16.msra.mxu0 0
        %867 = vmatpush.bf16.msra.mxu0 0
        %868 = vmatpush.bf16.msra.mxu0 0
        %869 = vmatpush.bf16.msra.mxu0 %v860
        %870 = vmatpush.bf16.msra.mxu0 %v859
        %871 = vmatmul.bf16.gmra.mxu0 %v786
        %v872 = vpop.f32.mrf.mxu0
        %v873 = vadd.f32 0.0, %v872
        %v874 = vpop.f32.mrf.mxu0
        %875 = vdwg.mxu0
        %v876 = vpack.c.bf16 %v798, %v798
        %v877 = vpack.c.bf16 %v823, %v823
        %v878 = vpack.c.bf16 %v848, %v848
        %v879 = vpack.c.bf16 %v873, %v873
        %v881 = vunpack.c.l.b16 %v876
        %v882 = vpack.c.b16 %v881, %v881
        %883 = vrot.lane.b32.xlu0 %v882, 120
        %v884 = vpop.permute.xlu0 %883
        %vm885 = vcmask 64512
        %v887 = vsel %vm885, %v876, 0
        %v890 = vsel %vm885, %v884, 0
        %892 = vmatpush.bf16.xpose.msra.mxu0 0
        %893 = vmatpush.bf16.xpose.msra.mxu0 0
        %894 = vmatpush.bf16.xpose.msra.mxu0 0
        %895 = vmatpush.bf16.xpose.msra.mxu0 0
        %896 = vmatpush.bf16.xpose.msra.mxu0 0
        %897 = vmatpush.bf16.xpose.msra.mxu0 0
        %898 = vmatpush.bf16.xpose.msra.mxu0 0
        %899 = vmatpush.bf16.xpose.msra.mxu0 %v890
        %900 = vmatmul.bf16.gmra.mxu0 %v887
        %v901 = vpop.f32.mrf.mxu0
        %v902 = vadd.f32 0.0, %v901
        %v903 = vpop.f32.mrf.mxu0
        %904 = vdwg.mxu0
        %v906 = vunpack.c.l.b16 %v877
        %v907 = vpack.c.b16 %v906, %v906
        %908 = vrot.lane.b32.xlu0 %v907, 120
        %v909 = vpop.permute.xlu0 %908
        %v911 = vsel %vm885, %v877, 0
        %v914 = vsel %vm885, %v909, 0
        %916 = vmatpush.bf16.xpose.msra.mxu0 0
        %917 = vmatpush.bf16.xpose.msra.mxu0 0
        %918 = vmatpush.bf16.xpose.msra.mxu0 0
        %919 = vmatpush.bf16.xpose.msra.mxu0 0
        %920 = vmatpush.bf16.xpose.msra.mxu0 0
        %921 = vmatpush.bf16.xpose.msra.mxu0 0
        %922 = vmatpush.bf16.xpose.msra.mxu0 0
        %923 = vmatpush.bf16.xpose.msra.mxu0 %v914
        %924 = vmatmul.bf16.gmra.mxu0 %v911
        %v925 = vpop.f32.mrf.mxu0
        %v926 = vadd.f32 0.0, %v925
        %v927 = vpop.f32.mrf.mxu0
        %928 = vdwg.mxu0
        %v930 = vunpack.c.l.b16 %v878
        %v931 = vpack.c.b16 %v930, %v930
        %932 = vrot.lane.b32.xlu0 %v931, 120
        %v933 = vpop.permute.xlu0 %932
        %v935 = vsel %vm885, %v878, 0
        %v938 = vsel %vm885, %v933, 0
        %940 = vmatpush.bf16.xpose.msra.mxu0 0
        %941 = vmatpush.bf16.xpose.msra.mxu0 0
        %942 = vmatpush.bf16.xpose.msra.mxu0 0
        %943 = vmatpush.bf16.xpose.msra.mxu0 0
        %944 = vmatpush.bf16.xpose.msra.mxu0 0
        %945 = vmatpush.bf16.xpose.msra.mxu0 0
        %946 = vmatpush.bf16.xpose.msra.mxu0 0
        %947 = vmatpush.bf16.xpose.msra.mxu0 %v938
        %948 = vmatmul.bf16.gmra.mxu0 %v935
        %v949 = vpop.f32.mrf.mxu0
        %v950 = vadd.f32 0.0, %v949
        %v951 = vpop.f32.mrf.mxu0
        %952 = vdwg.mxu0
        %v954 = vunpack.c.l.b16 %v879
        %v955 = vpack.c.b16 %v954, %v954
        %956 = vrot.lane.b32.xlu0 %v955, 120
        %v957 = vpop.permute.xlu0 %956
        %v959 = vsel %vm885, %v879, 0
        %v962 = vsel %vm885, %v957, 0
        %964 = vmatpush.bf16.xpose.msra.mxu0 0
        %965 = vmatpush.bf16.xpose.msra.mxu0 0
        %966 = vmatpush.bf16.xpose.msra.mxu0 0
        %967 = vmatpush.bf16.xpose.msra.mxu0 0
        %968 = vmatpush.bf16.xpose.msra.mxu0 0
        %969 = vmatpush.bf16.xpose.msra.mxu0 0
        %970 = vmatpush.bf16.xpose.msra.mxu0 0
        %971 = vmatpush.bf16.xpose.msra.mxu0 %v962
        %972 = vmatmul.bf16.gmra.mxu0 %v959
        %v973 = vpop.f32.mrf.mxu0
        %v974 = vadd.f32 0.0, %v973
        %v975 = vpop.f32.mrf.mxu0
        %976 = vdwg.mxu0
        %v977 = vsel %vm885, %v902, -inf
        %978 = vmax.xlane.f32.xlu0 %v977
        %v979 = vpop.xlane.xlu0 %978
        %v980 = vsel %vm885, %v926, -inf
        %981 = vmax.xlane.f32.xlu0 %v980
        %v982 = vpop.xlane.xlu0 %981
        %v983 = vsel %vm885, %v950, -inf
        %984 = vmax.xlane.f32.xlu0 %v983
        %v985 = vpop.xlane.xlu0 %984
        %v986 = vsel %vm885, %v974, -inf
        %987 = vmax.xlane.f32.xlu0 %v986
        %v988 = vpop.xlane.xlu0 %987
        %v989 = vsub.f32 %v902, %v979
        %v990 = vsub.f32 %v926, %v982
        %v991 = vsub.f32 %v950, %v985
        %v992 = vsub.f32 %v974, %v988
        %v993 = vmul.f32 %v989, 1.442695
        %v994 = vpow.pop %v993
        %v995 = vmul.f32 %v990, 1.442695
        %v996 = vpow.pop %v995
        %v997 = vmul.f32 %v991, 1.442695
        %v998 = vpow.pop %v997
        %v999 = vmul.f32 %v992, 1.442695
        %v1000 = vpow.pop %v999
        %v1001 = vsel %vm885, %v994, 0.0
        %1002 = vadd.xlane.f32.xlu0 %v1001
        %v1003 = vpop.xlane.xlu0 %1002
        %v1004 = vsel %vm885, %v996, 0.0
        %1005 = vadd.xlane.f32.xlu0 %v1004
        %v1006 = vpop.xlane.xlu0 %1005
        %v1007 = vsel %vm885, %v998, 0.0
        %1008 = vadd.xlane.f32.xlu0 %v1007
        %v1009 = vpop.xlane.xlu0 %1008
        %v1010 = vsel %vm885, %v1000, 0.0
        %1011 = vadd.xlane.f32.xlu0 %v1010
        %v1012 = vpop.xlane.xlu0 %1011
        %v1013 = vrcp.pop %v1003
        %v1014 = vmul.f32 %v1003, %v1013
        %v1015 = vsub.f32 1.0, %v1014
        %v1016 = vmul.f32 %v1013, %v1015
        %v1017 = vadd.f32 %v1013, %v1016
        %vm1018 = vweird.f32 %v1003
        %vm1019 = vweird.f32 %v1013
        %vm1020 = vmor %vm1018, %vm1019
        %v1021 = vsel %vm1020, %v1013, %v1017
        %v1022 = vand.u32 2147483647, %v1003
        %vm1023 = vcmp.eq.f32.partialorder %v1022, 8.507059e+37
        %v1024 = vand.u32 %v1003, 2147483648
        %v1025 = vor.u32 1.1754944e-38, %v1024
        %v1026 = vsel %vm1023, %v1025, %v1021
        %v1027 = vmul.f32 %v994, %v1026
        %v1028 = vrcp.pop %v1006
        %v1029 = vmul.f32 %v1006, %v1028
        %v1030 = vsub.f32 1.0, %v1029
        %v1031 = vmul.f32 %v1028, %v1030
        %v1032 = vadd.f32 %v1028, %v1031
        %vm1033 = vweird.f32 %v1006
        %vm1034 = vweird.f32 %v1028
        %vm1035 = vmor %vm1033, %vm1034
        %v1036 = vsel %vm1035, %v1028, %v1032
        %v1037 = vand.u32 2147483647, %v1006
        %vm1038 = vcmp.eq.f32.partialorder %v1037, 8.507059e+37
        %v1039 = vand.u32 %v1006, 2147483648
        %v1040 = vor.u32 1.1754944e-38, %v1039
        %v1041 = vsel %vm1038, %v1040, %v1036
        %v1042 = vmul.f32 %v996, %v1041
        %v1043 = vrcp.pop %v1009
        %v1044 = vmul.f32 %v1009, %v1043
        %v1045 = vsub.f32 1.0, %v1044
        %v1046 = vmul.f32 %v1043, %v1045
        %v1047 = vadd.f32 %v1043, %v1046
        %vm1048 = vweird.f32 %v1009
        %vm1049 = vweird.f32 %v1043
        %vm1050 = vmor %vm1048, %vm1049
        %v1051 = vsel %vm1050, %v1043, %v1047
        %v1052 = vand.u32 2147483647, %v1009
        %vm1053 = vcmp.eq.f32.partialorder %v1052, 8.507059e+37
        %v1054 = vand.u32 %v1009, 2147483648
        %v1055 = vor.u32 1.1754944e-38, %v1054
        %v1056 = vsel %vm1053, %v1055, %v1051
        %v1057 = vmul.f32 %v998, %v1056
        %v1058 = vrcp.pop %v1012
        %v1059 = vmul.f32 %v1012, %v1058
        %v1060 = vsub.f32 1.0, %v1059
        %v1061 = vmul.f32 %v1058, %v1060
        %v1062 = vadd.f32 %v1058, %v1061
        %vm1063 = vweird.f32 %v1012
        %vm1064 = vweird.f32 %v1058
        %vm1065 = vmor %vm1063, %vm1064
        %v1066 = vsel %vm1065, %v1058, %v1062
        %v1067 = vand.u32 2147483647, %v1012
        %vm1068 = vcmp.eq.f32.partialorder %v1067, 8.507059e+37
        %v1069 = vand.u32 %v1012, 2147483648
        %v1070 = vor.u32 1.1754944e-38, %v1069
        %v1071 = vsel %vm1068, %v1070, %v1066
        %v1072 = vmul.f32 %v1000, %v1071
        %v1073 = vpack.c.bf16 %v1027, %v1027
        %v1074 = vpack.c.bf16 %v1042, %v1042
        %v1075 = vpack.c.bf16 %v1057, %v1057
        %v1076 = vpack.c.bf16 %v1072, %v1072
        %1077 = vrot.lane.b32.xlu0 %v882, 112
        %v1078 = vpop.permute.xlu0 %1077
        %v1080 = vsel %vm885, %v1073, 0
        %vm1082 = vcmask 1043456
        %v1084 = vsel %vm1082, %v1078, 0
        %1086 = vmatpush.bf16.msra.mxu0 0
        %1087 = vmatpush.bf16.msra.mxu0 0
        %1088 = vmatpush.bf16.msra.mxu0 0
        %1089 = vmatpush.bf16.msra.mxu0 0
        %1090 = vmatpush.bf16.msra.mxu0 0
        %1091 = vmatpush.bf16.msra.mxu0 0
        %1092 = vmatpush.bf16.msra.mxu0 0
        %1093 = vmatpush.bf16.msra.mxu0 %v1084
        %1094 = vmatmul.bf16.gmra.mxu0 %v1080
        %v1095 = vpop.f32.mrf.mxu0
        %v1096 = vadd.f32 0.0, %v1095
        %v1097 = vpop.f32.mrf.mxu0
        %1098 = vdwg.mxu0
        %1099 = vrot.lane.b32.xlu0 %v907, 112
        %v1100 = vpop.permute.xlu0 %1099
        %v1102 = vsel %vm885, %v1074, 0
        %v1105 = vsel %vm1082, %v1100, 0
        %1107 = vmatpush.bf16.msra.mxu0 0
        %1108 = vmatpush.bf16.msra.mxu0 0
        %1109 = vmatpush.bf16.msra.mxu0 0
        %1110 = vmatpush.bf16.msra.mxu0 0
        %1111 = vmatpush.bf16.msra.mxu0 0
        %1112 = vmatpush.bf16.msra.mxu0 0
        %1113 = vmatpush.bf16.msra.mxu0 0
        %1114 = vmatpush.bf16.msra.mxu0 %v1105
        %1115 = vmatmul.bf16.gmra.mxu0 %v1102
        %v1116 = vpop.f32.mrf.mxu0
        %v1117 = vadd.f32 0.0, %v1116
        %v1118 = vpop.f32.mrf.mxu0
        %1119 = vdwg.mxu0
        %1120 = vrot.lane.b32.xlu0 %v931, 112
        %v1121 = vpop.permute.xlu0 %1120
        %v1123 = vsel %vm885, %v1075, 0
        %v1126 = vsel %vm1082, %v1121, 0
        %1128 = vmatpush.bf16.msra.mxu0 0
        %1129 = vmatpush.bf16.msra.mxu0 0
        %1130 = vmatpush.bf16.msra.mxu0 0
        %1131 = vmatpush.bf16.msra.mxu0 0
        %1132 = vmatpush.bf16.msra.mxu0 0
        %1133 = vmatpush.bf16.msra.mxu0 0
        %1134 = vmatpush.bf16.msra.mxu0 0
        %1135 = vmatpush.bf16.msra.mxu0 %v1126
        %1136 = vmatmul.bf16.gmra.mxu0 %v1123
        %v1137 = vpop.f32.mrf.mxu0
        %v1138 = vadd.f32 0.0, %v1137
        %v1139 = vpop.f32.mrf.mxu0
        %1140 = vdwg.mxu0
        %1141 = vrot.lane.b32.xlu0 %v955, 112
        %v1142 = vpop.permute.xlu0 %1141
        %v1144 = vsel %vm885, %v1076, 0
        %v1147 = vsel %vm1082, %v1142, 0
        %1149 = vmatpush.bf16.msra.mxu0 0
        %1150 = vmatpush.bf16.msra.mxu0 0
        %1151 = vmatpush.bf16.msra.mxu0 0
        %1152 = vmatpush.bf16.msra.mxu0 0
        %1153 = vmatpush.bf16.msra.mxu0 0
        %1154 = vmatpush.bf16.msra.mxu0 0
        %1155 = vmatpush.bf16.msra.mxu0 0
        %1156 = vmatpush.bf16.msra.mxu0 %v1147
        %1157 = vmatmul.bf16.gmra.mxu0 %v1144
        %v1158 = vpop.f32.mrf.mxu0
        %v1159 = vadd.f32 0.0, %v1158
        %v1160 = vpop.f32.mrf.mxu0
        %1161 = vdwg.mxu0
        %v1162 = vpack.c.bf16 %v1096, %v1096
        %v1163 = vpack.c.bf16 %v1117, %v1117
        %v1164 = vpack.c.bf16 %v1138, %v1138
        %v1165 = vpack.c.bf16 %v1159, %v1159
        %v1166 = vld [vmem:[%s681] sm:$0xf]
        %v1167 = vld [vmem:[%s681 + $0x4] sm:$0xf]
        %v1168 = vld [vmem:[%s681 + $0x8] sm:$0xf]
        %v1169 = vld [vmem:[%s681 + $0xc] sm:$0xf]
        %v1171 = vsel %vm885, %v1162, 0
        %v1174 = vsel %vm1082, %v1166, 0
        %1176 = vmatpush.bf16.msra.mxu0 0
        %1177 = vmatpush.bf16.msra.mxu0 0
        %1178 = vmatpush.bf16.msra.mxu0 0
        %1179 = vmatpush.bf16.msra.mxu0 0
        %1180 = vmatpush.bf16.msra.mxu0 0
        %1181 = vmatpush.bf16.msra.mxu0 0
        %1182 = vmatpush.bf16.msra.mxu0 0
        %1183 = vmatpush.bf16.msra.mxu0 %v1174
        %1184 = vmatmul.bf16.gmra.mxu0 %v1171
        %v1185 = vpop.f32.mrf.mxu0
        %v1186 = vadd.f32 0.0, %v1185
        %v1187 = vpop.f32.mrf.mxu0
        %1188 = vdwg.mxu0
        %v1190 = vsel %vm885, %v1163, 0
        %v1193 = vsel %vm1082, %v1167, 0
        %1195 = vmatpush.bf16.msra.mxu0 0
        %1196 = vmatpush.bf16.msra.mxu0 0
        %1197 = vmatpush.bf16.msra.mxu0 0
        %1198 = vmatpush.bf16.msra.mxu0 0
        %1199 = vmatpush.bf16.msra.mxu0 0
        %1200 = vmatpush.bf16.msra.mxu0 0
        %1201 = vmatpush.bf16.msra.mxu0 0
        %1202 = vmatpush.bf16.msra.mxu0 %v1193
        %1203 = vmatmul.bf16.gmra.mxu0 %v1190
        %v1204 = vpop.f32.mrf.mxu0
        %v1205 = vadd.f32 0.0, %v1204
        %v1206 = vpop.f32.mrf.mxu0
        %1207 = vdwg.mxu0
        %v1209 = vsel %vm885, %v1164, 0
        %v1212 = vsel %vm1082, %v1168, 0
        %1214 = vmatpush.bf16.msra.mxu0 0
        %1215 = vmatpush.bf16.msra.mxu0 0
        %1216 = vmatpush.bf16.msra.mxu0 0
        %1217 = vmatpush.bf16.msra.mxu0 0
        %1218 = vmatpush.bf16.msra.mxu0 0
        %1219 = vmatpush.bf16.msra.mxu0 0
        %1220 = vmatpush.bf16.msra.mxu0 0
        %1221 = vmatpush.bf16.msra.mxu0 %v1212
        %1222 = vmatmul.bf16.gmra.mxu0 %v1209
        %v1223 = vpop.f32.mrf.mxu0
        %v1224 = vadd.f32 0.0, %v1223
        %v1225 = vpop.f32.mrf.mxu0
        %1226 = vdwg.mxu0
        %v1228 = vsel %vm885, %v1165, 0
        %v1231 = vsel %vm1082, %v1169, 0
        %1233 = vmatpush.bf16.msra.mxu0 0
        %1234 = vmatpush.bf16.msra.mxu0 0
        %1235 = vmatpush.bf16.msra.mxu0 0
        %1236 = vmatpush.bf16.msra.mxu0 0
        %1237 = vmatpush.bf16.msra.mxu0 0
        %1238 = vmatpush.bf16.msra.mxu0 0
        %1239 = vmatpush.bf16.msra.mxu0 0
        %1240 = vmatpush.bf16.msra.mxu0 %v1231
        %1241 = vmatmul.bf16.gmra.mxu0 %v1228
        %v1242 = vpop.f32.mrf.mxu0
        %v1243 = vadd.f32 0.0, %v1242
        %v1244 = vpop.f32.mrf.mxu0
        %1245 = vdwg.mxu0
        %v1246 = vsel %vm718, %v1186, 0.0
        %v1247 = vsel %vm718, %v1205, 0.0
        %v1248 = vadd.f32 %v1246, %v1247
        %v1249 = vsel %vm718, %v1224, 0.0
        %v1250 = vadd.f32 %v1248, %v1249
        %v1251 = vsel %vm718, %v1243, 0.0
        %v1252 = vadd.f32 %v1250, %v1251
        %v1253 = vadd.f32 %v715, %v1252
        %v1254 = vld [vmem:[%s684] sm:$0x1]
        %v1256 = vperm.slane %v1254, 0
        %v1258 = vadd.f32 %v1253, %v1256
        %v1259 = vld [vmem:[%s687] sm:$0x1]
        %v1260 = vld [vmem:[%s690] sm:$0x1]
        %v1261 = vsel %vm718, %v1258, 0.0
        %1262 = vadd.xlane.f32.xlu0 %v1261
        %v1263 = vpop.xlane.xlu0 %1262
        %v1264 = vmul.f32 %v1263, %v728
        %v1265 = vsub.f32 %v1258, %v1264
        %v1266 = vmul.f32 %v1265, %v1265
        %v1267 = vsel %vm718, %v1266, 0.0
        %1268 = vadd.xlane.f32.xlu0 %v1267
        %v1269 = vpop.xlane.xlu0 %1268
        %v1270 = vmul.f32 %v1269, %v728
        %v1271 = vadd.f32 %v1270, 1e-05
        %v1272 = vrsqrt.pop %v1271
        %v1273 = vmul.f32 %v1272, %v1271
        %v1274 = vmul.f32 %v1273, %v1272
        %v1275 = vmul.f32 0.5, %v1274
        %v1276 = vsub.f32 1.5, %v1275
        %v1277 = vmul.f32 %v1272, %v1276
        %vm1278 = vweird.f32 %v1271
        %vm1279 = vweird.f32 %v1272
        %vm1280 = vmor %vm1278, %vm1279
        %v1281 = vsel %vm1280, %v1272, %v1277
        %v1282 = vmul.f32 %v1265, %v1281
        %v1284 = vperm.slane %v1259, 0
        %v1286 = vmul.f32 %v1282, %v1284
        %v1288 = vperm.slane %v1260, 0
        %v1290 = vadd.f32 %v1286, %v1288
        %v1291 = vpack.c.bf16 %v1290, %v1290
        %v1292 = vld [vmem:[%s695] sm:$0xf]
        %v1293 = vld [vmem:[%s695 + $0x4] sm:$0xf]
        %v1294 = vld [vmem:[%s695 + $0x8] sm:$0xf]
        %v1295 = vld [vmem:[%s695 + $0xc] sm:$0xf]
        %v1296 = vld [vmem:[%s698] sm:$0x1]
        %v1298 = vperm.slane %v1296, 0
        %v1304 = vunpack.c.l.b16 %v1292
        %v1305 = vunpack.c.l.b16 %v1293
        %v1306 = vunpack.c.l.b16 %v1294
        %v1307 = vunpack.c.l.b16 %v1295
        %v1308 = vpack.c.b16 %v1305, %v1304
        %v1309 = vpack.c.b16 %v1307, %v1306
        %v1313 = vsel %vm718, %v1291, 0
        %1315 = vmatpush.bf16.msra.mxu0 0
        %1316 = vmatpush.bf16.msra.mxu0 0
        %1317 = vmatpush.bf16.msra.mxu0 0
        %1318 = vmatpush.bf16.msra.mxu0 0
        %1319 = vmatpush.bf16.msra.mxu0 0
        %1320 = vmatpush.bf16.msra.mxu0 0
        %1321 = vmatpush.bf16.msra.mxu0 %v1309
        %1322 = vmatpush.bf16.msra.mxu0 %v1308
        %1323 = vmatmul.bf16.gmra.mxu0 %v1313
        %v1324 = vpop.f32.mrf.mxu0
        %v1325 = vadd.f32 %v1298, %v1324
        %v1326 = vpop.f32.mrf.mxu0
        %1327 = vdwg.mxu0
        %v1328 = vmul.f32 %v1325, 0.5
        %v1329 = vmul.f32 %v1325, 0.044715
        %v1330 = vmul.f32 %v1329, %v1325
        %v1331 = vmul.f32 %v1330, %v1325
        %v1332 = vadd.f32 %v1325, %v1331
        %v1333 = vmul.f32 %v1332, 0.7978846
        %v1334 = vtanh.pop %v1333
        %v1335 = vadd.f32 %v1334, 1.0
        %v1336 = vmul.f32 %v1328, %v1335
        %v1337 = vpack.c.bf16 %v1336, %v1336
        %v1338 = vld [vmem:[%s703] sm:$0xf]
        %v1339 = vld [vmem:[%s703 + $0x4] sm:$0xf]
        %v1340 = vld [vmem:[%s703 + $0x8] sm:$0xf]
        %v1341 = vld [vmem:[%s703 + $0xc] sm:$0xf]
        %v1342 = vld [vmem:[%s703 + $0x10] sm:$0xf]
        %v1343 = vld [vmem:[%s703 + $0x14] sm:$0xf]
        %v1344 = vld [vmem:[%s703 + $0x18] sm:$0xf]
        %v1345 = vld [vmem:[%s703 + $0x1c] sm:$0xf]
        %v1346 = vld [vmem:[%s703 + $0x20] sm:$0xf]
        %v1347 = vld [vmem:[%s703 + $0x24] sm:$0xf]
        %v1348 = vld [vmem:[%s703 + $0x28] sm:$0xf]
        %v1349 = vld [vmem:[%s703 + $0x2c] sm:$0xf]
        %v1350 = vld [vmem:[%s703 + $0x30] sm:$0xf]
        %v1351 = vld [vmem:[%s703 + $0x34] sm:$0xf]
        %v1352 = vld [vmem:[%s703 + $0x38] sm:$0xf]
        %v1353 = vld [vmem:[%s703 + $0x3c] sm:$0xf]
        %v1354 = vld [vmem:[%s706] sm:$0x1]
        %v1356 = vperm.slane %v1354, 0
        %v1374 = vunpack.c.l.b16 %v1338
        %v1375 = vunpack.c.l.b16 %v1339
        %v1376 = vunpack.c.l.b16 %v1340
        %v1377 = vunpack.c.l.b16 %v1341
        %v1378 = vunpack.c.l.b16 %v1342
        %v1379 = vunpack.c.l.b16 %v1343
        %v1380 = vunpack.c.l.b16 %v1344
        %v1381 = vunpack.c.l.b16 %v1345
        %v1382 = vunpack.c.l.b16 %v1346
        %v1383 = vunpack.c.l.b16 %v1347
        %v1384 = vunpack.c.l.b16 %v1348
        %v1385 = vunpack.c.l.b16 %v1349
        %v1386 = vunpack.c.l.b16 %v1350
        %v1387 = vunpack.c.l.b16 %v1351
        %v1388 = vunpack.c.l.b16 %v1352
        %v1389 = vunpack.c.l.b16 %v1353
        %v1390 = vpack.c.b16 %v1375, %v1374
        %v1391 = vpack.c.b16 %v1377, %v1376
        %v1392 = vpack.c.b16 %v1379, %v1378
        %v1393 = vpack.c.b16 %v1381, %v1380
        %v1394 = vpack.c.b16 %v1383, %v1382
        %v1395 = vpack.c.b16 %v1385, %v1384
        %v1396 = vpack.c.b16 %v1387, %v1386
        %v1397 = vpack.c.b16 %v1389, %v1388
        %1406 = vmatpush.bf16.msra.mxu0 %v1397
        %1407 = vmatpush.bf16.msra.mxu0 %v1396
        %1408 = vmatpush.bf16.msra.mxu0 %v1395
        %1409 = vmatpush.bf16.msra.mxu0 %v1394
        %1410 = vmatpush.bf16.msra.mxu0 %v1393
        %1411 = vmatpush.bf16.msra.mxu0 %v1392
        %1412 = vmatpush.bf16.msra.mxu0 %v1391
        %1413 = vmatpush.bf16.msra.mxu0 %v1390
        %1414 = vmatmul.bf16.gmra.mxu0 %v1337
        %v1415 = vpop.f32.mrf.mxu0
        %v1416 = vadd.f32 %v1356, %v1415
        %v1417 = vpop.f32.mrf.mxu0
        %1418 = vdwg.mxu0
        %v1419 = vadd.f32 %v1258, %v1416
        %1420 = vst.msk [vmem:[#allocation2] sm:$0xff] %vm718, %v1419
        %p1421 = scmp.eq.s32.totalorder %s35, 1
        // Predicated region
        $region89: #{tpu_custom_call.1} parent=83 // pred_check
          %p1422 = pneg %p1421
        $region90: #{tpu_custom_call.1} parent=83 // pred_check_branch
          %1424 = sbr.rel (%p1422) target = $region92
        $region91: #{tpu_custom_call.1} parent=83 // pred_region
          %v1425 = vld [vmem:[%s12] sm:$0x1]
          %v1426 = vld [vmem:[%s13] sm:$0x1]
          %vm1427 = vcmask 261124
          %v1428 = vsel %vm1427, %v1419, 0.0
          %1429 = vadd.xlane.f32.xlu0 %v1428
          %v1430 = vpop.xlane.xlu0 %1429
          %v1431 = vmul.f32 %v1430, %v728
          %v1432 = vsub.f32 %v1419, %v1431
          %v1433 = vmul.f32 %v1432, %v1432
          %v1434 = vsel %vm1427, %v1433, 0.0
          %1435 = vadd.xlane.f32.xlu0 %v1434
          %v1436 = vpop.xlane.xlu0 %1435
          %v1437 = vmul.f32 %v1436, %v728
          %v1438 = vadd.f32 %v1437, 1e-05
          %v1439 = vrsqrt.pop %v1438
          %v1440 = vmul.f32 %v1439, %v1438
          %v1441 = vmul.f32 %v1440, %v1439
          %v1442 = vmul.f32 0.5, %v1441
          %v1443 = vsub.f32 1.5, %v1442
          %v1444 = vmul.f32 %v1439, %v1443
          %vm1445 = vweird.f32 %v1438
          %vm1446 = vweird.f32 %v1439
          %vm1447 = vmor %vm1445, %vm1446
          %v1448 = vsel %vm1447, %v1439, %v1444
          %v1449 = vmul.f32 %v1432, %v1448
          %v1451 = vperm.slane %v1425, 0
          %v1453 = vmul.f32 %v1449, %v1451
          %v1455 = vperm.slane %v1426, 0
          %v1457 = vadd.f32 %v1453, %v1455
          %v1458 = vpack.c.bf16 %v1457, %v1457
          %v1459 = vld [vmem:[%s14] sm:$0xf]
          %v1460 = vld [vmem:[%s14 + $0x4] sm:$0xf]
          %v1461 = vld [vmem:[%s14 + $0x8] sm:$0xf]
          %v1462 = vld [vmem:[%s14 + $0xc] sm:$0xf]
          %v1463 = vld [vmem:[%s15] sm:$0x1]
          %v1465 = vperm.slane %v1463, 0
          %v1468 = vrot.slane %v1458, 2
          %v1473 = vunpack.c.l.b16 %v1459
          %v1474 = vunpack.c.l.b16 %v1460
          %v1475 = vunpack.c.l.b16 %v1461
          %v1476 = vunpack.c.l.b16 %v1462
          %v1477 = vpack.c.b16 %v1474, %v1473
          %v1478 = vpack.c.b16 %v1476, %v1475
          %v1482 = vsel %vm718, %v1468, 0
          %1484 = vmatpush.bf16.msra.mxu0 0
          %1485 = vmatpush.bf16.msra.mxu0 0
          %1486 = vmatpush.bf16.msra.mxu0 0
          %1487 = vmatpush.bf16.msra.mxu0 0
          %1488 = vmatpush.bf16.msra.mxu0 0
          %1489 = vmatpush.bf16.msra.mxu0 0
          %1490 = vmatpush.bf16.msra.mxu0 %v1478
          %1491 = vmatpush.bf16.msra.mxu0 %v1477
          %1492 = vmatmul.bf16.gmra.mxu0 %v1482
          %v1493 = vpop.f32.mrf.mxu0
          %v1494 = vadd.f32 %v1465, %v1493
          %v1495 = vpop.f32.mrf.mxu0
          %1496 = vdwg.mxu0
          %vm1497 = vcmask 125952
          %1498 = vst.msk [vmem:[%s661] sm:$0xf] %vm1497, %v1494
        $region92: #{tpu_custom_call.1} parent=83 // pred_fallthru
          _
        %s1499 = sand.u32 %s446, 1
        %s1500 = scalar_lea.sflag [#allocation4], %s1499
        %s1501 = sand.u32 %s446, 1
        %s1502 = smul.addr %s1501, 4
        %s1503 = scalar_lea.vmem [#allocation3], %s1502
        // Predicated region
        $region93: #{tpu_custom_call.1} parent=83 // pred_check
          %p1504 = pneg %p456
        $region94: #{tpu_custom_call.1} parent=83 // pred_check_branch
          %1506 = sbr.rel (%p1504) target = $region96
        $region95: #{tpu_custom_call.1} parent=83 // pred_region
          %1508 = vsyncadd %s1500, 0
          %s1509 = smul.addr %s34, 4
          %s1510 = scalar_lea.hbm %s16, %s1509
          %s1512 = sshll.u32 %s1503, 4
          %s1513 = int_to_ptr.vmem [resolvable:$true] %s1512
          %s1514 = sshll.u32 %s1510, 4
          %s1515 = int_to_ptr.hbm [resolvable:$true] %s1514
          %1517 = dma.vmem_to_hbm [thread:$0]  %s1513, 64, %s1515, %s1500
        $region96: #{tpu_custom_call.1} parent=83 // pred_fallthru
          _
      $region84: #{tpu_custom_call.1} parent=5 // pred_fallthru
        _
      %p1518 = scmp.le.s32.totalorder 2, %s25
      // Predicated region
      $region97: #{tpu_custom_call.1} parent=5 // pred_check
        %p1519 = pneg %p1518
      $region98: #{tpu_custom_call.1} parent=5 // pred_check_branch
        %1521 = sbr.rel (%p1519) target = $region100
      $region99: #{tpu_custom_call.1} parent=5 // pred_region
        %s1522 = ssub.s32 %s25, 2
        // Predicated region
        $region101: #{tpu_custom_call.1} parent=99 // pred_check
          %p1523 = pneg %p462
        $region102: #{tpu_custom_call.1} parent=99 // pred_check_branch
          %1525 = sbr.rel (%p1523) target = $region104
        $region103: #{tpu_custom_call.1} parent=99 // pred_region
          %s1526 = sand.u32 %s447, 1
          %s1527 = scalar_lea.sflag [#allocation4], %s1526
          %s1528 = sand.u32 %s447, 1
          %s1529 = smul.addr %s1528, 4
          %s1530 = scalar_lea.vmem [#allocation3], %s1529
          %1532 = dma.done %s1527, 64
        $region104: #{tpu_custom_call.1} parent=99 // pred_fallthru
          _
      $region100: #{tpu_custom_call.1} parent=5 // pred_fallthru
        _
    $region6: #{tpu_custom_call.1} parent=1 // loop_footer
      %s29 = sadd.s32 1, %s25
    $region7: #{tpu_custom_call.1} parent=1 // loop_footer_branch
      %24 = sbr.rel target = $region3
    $region8: #{tpu_custom_call.1} parent=1 // loop_exit
      _
    %1533 = vsyncpa [#allocation4], 1
    %s1534 = scalar_lea.sflag [#allocation4], 1
    %1535 = vsyncpa %s1534, 1

</llo_original>
